<compile_context>
chip_gen: v6e
topology: v6e:2x2x1
jax: 0.10.0
libtpu: 0.0.40
codegen_flags: <defaults>
</compile_context>

<pallas_src>
import jax
import jax.numpy as jnp
from jax.experimental import pallas as pl
from jax.experimental.pallas import tpu as pltpu


def _coord_att_kernel(x_ref, w1_ref, b1_ref, whw_ref, bhw_ref,
                      selcat_ref, colscale_ref, exph_ref, expw_ref, out_ref):
    oup = out_ref.shape[1]

    # (C, HWp) lane-dense load; bf16 MXU operand, f32 accumulation throughout.
    x2d = x_ref[0].astype(jnp.bfloat16)

    # Both adaptive average pools + cat([x_h, x_w]) in ONE MXU matmul against a
    # {0,1} bf16 selector; the exact 1/W and 1/H mean scaling is applied as an
    # f32 post-matmul column scale (exact even for non-power-of-two W/H).
    feat = jnp.dot(x2d, selcat_ref[...], preferred_element_type=jnp.float32)
    feat = feat * colscale_ref[...]                                # (C, H+W) f32

    # conv1 (1x1) with BatchNorm folded in, then h_swish (elementwise in f32:
    # v5e's VPU/EUP have no bf16 path and elementwise is not the bottleneck).
    y = jnp.dot(w1_ref[...], feat.astype(jnp.bfloat16),
                preferred_element_type=jnp.float32) + b1_ref[...]  # (mip, H+W)
    y = y * jnp.clip(y + 3.0, 0.0, 6.0) * (1.0 / 6.0)              # h_swish

    # conv_h and conv_w stacked into a single matmul + single sigmoid; the
    # a_h / a_w split is a cheap sublane slice (no lane-axis slicing).
    a = jax.nn.sigmoid(
        jnp.dot(whw_ref[...], y.astype(jnp.bfloat16),
                preferred_element_type=jnp.float32) + bhw_ref[...])  # (2*oup, H+W)
    a_h = a[:oup].astype(jnp.bfloat16)
    a_w = a[oup:].astype(jnp.bfloat16)

    # Expansion matmuls broadcast a_h over W and a_w over H straight into the
    # lane-dense (oup, HWp) output slab: out[o, h*W+w] = a_h[o,h] * a_w[o,w].
    # Zero rows mask the opposite branch, so no lane-axis split is needed.
    out = (jnp.dot(a_h, exph_ref[...], preferred_element_type=jnp.float32)
           * jnp.dot(a_w, expw_ref[...], preferred_element_type=jnp.float32))
    out_ref[0] = out.astype(out_ref.dtype)


def coord_att(x, params, *, eps=1e-5):
    """x: (N, C, H, W). Returns the (N, oup, H, W) attention map a_w * a_h.

    Pass x in bf16 to halve HBM traffic; all accumulation stays in f32.
    """
    N, C, H, W = x.shape
    oup = params["wh"].shape[0]
    mip = params["w1"].shape[0]
    HW = H * W
    HWp = ((HW + 127) // 128) * 128        # lane-dense: unmasked vld/vst
    mip_p = ((mip + 15) // 16) * 16        # bf16 sublane tile
    f32, bf16 = jnp.float32, jnp.bfloat16

    # ---- host-side prep (constants) ----------------------------------------
    # Fold eval-mode BatchNorm (running stats) into the 1x1 conv.
    # TODO(synk): training-mode BN (batch statistics) is not implemented.
    scale = params["gamma"] * jax.lax.rsqrt(params["var"] + eps)       # (mip,1)
    w1f = params["w1"] * scale
    b1f = params["b1"] * scale + params["beta"] - params["mean"] * scale
    w1f = jnp.pad(w1f, ((0, mip_p - mip), (0, 0))).astype(bf16)        # (mip_p,C)
    b1f = jnp.pad(b1f, ((0, mip_p - mip), (0, 0))).astype(f32)         # (mip_p,1)

    # conv_h / conv_w stacked -> one matmul + one sigmoid inside the kernel.
    whw = jnp.concatenate([params["wh"], params["ww"]], axis=0)        # (2*oup,mip)
    whw = jnp.pad(whw, ((0, 0), (0, mip_p - mip))).astype(bf16)
    bhw = jnp.concatenate([params["bh"], params["bw"]], axis=0).astype(f32)

    # {0,1} selector / expansion matrices (exact in bf16).  Rows/columns past
    # HW are zero so the zero-padded tail of x / out falls through harmlessly.
    # TODO(synk): on v5e/v6e these could be int8 for the full-rate int MXU path.
    k = jnp.arange(HWp, dtype=jnp.int32)
    valid = (k < HW)[:, None]
    sel_h = ((k[:, None] // W == jnp.arange(H, dtype=jnp.int32)[None, :])
             & valid).astype(bf16)                                      # (HWp,H)
    sel_w = ((k[:, None] % W == jnp.arange(W, dtype=jnp.int32)[None, :])
             & valid).astype(bf16)                                      # (HWp,W)
    sel_cat = jnp.concatenate([sel_h, sel_w], axis=1)                   # (HWp,H+W)
    col_scale = jnp.concatenate([jnp.full((1, H), 1.0 / W, f32),
                                 jnp.full((1, W), 1.0 / H, f32)], axis=1)
    exp_h = jnp.concatenate([sel_h.T, jnp.zeros((W, HWp), bf16)], axis=0)
    exp_w = jnp.concatenate([jnp.zeros((H, HWp), bf16), sel_w.T], axis=0)

    consts = [w1f, b1f, whw, bhw, sel_cat, col_scale, exp_h, exp_w]

    # Lane-dense, 128-padded input layout.
    x2 = x.reshape(N, C, HW)
    if HWp != HW:
        x2 = jnp.pad(x2, ((0, 0), (0, 0), (0, HWp - HW)))

    # ---- cost / VMEM bookkeeping --------------------------------------------
    isz = x.dtype.itemsize
    const_bytes = sum(int(c.size) * c.dtype.itemsize for c in consts)
    flops = 2 * N * (C * HWp * (H + W) + mip_p * C * (H + W)
                     + 2 * oup * mip_p * (H + W) + 2 * oup * (H + W) * HWp)
    cost = pl.CostEstimate(
        flops=int(flops),
        transcendentals=int(N * 2 * oup * (H + W)),
        bytes_accessed=int(N * (C + oup) * HWp * isz + const_bytes))
    # Double-buffered x/out blocks + constants + slack for in-kernel f32/bf16
    # intermediates.  TODO(synk): for very large C*H*W on v7x (64 MiB VMEM) add
    # a C reduction grid axis ("arbitrary") instead of growing this budget.
    need = (2 * C * HWp * isz + 2 * oup * HWp * isz + 2 * const_bytes
            + (2 * C + 4 * oup + 2 * mip_p) * HWp * 4)
    vmem_limit = int(min(max(need * 1.25, 16 * 2**20), 128 * 2**20))

    # ---- pallas_call ---------------------------------------------------------
    def _build(single_buffer_consts):
        def _const_spec(a):
            kwargs = ({"pipeline_mode": pl.Buffered(1)}
                      if single_buffer_consts else {})
            nd = a.ndim
            return pl.BlockSpec(a.shape, lambda n, _nd=nd: (0,) * _nd, **kwargs)

        # TODO(synk): for small N on v7x (2 TensorCores) add a second "parallel"
        # grid axis over oup tiles so both cores stay busy.
        return pl.pallas_call(
            _coord_att_kernel,
            out_shape=jax.ShapeDtypeStruct((N, oup, HWp), x.dtype),
            grid=(N,),
            in_specs=[pl.BlockSpec((1, C, HWp), lambda n: (n, 0, 0))]
                     + [_const_spec(c) for c in consts],
            out_specs=pl.BlockSpec((1, oup, HWp), lambda n: (n, 0, 0)),
            compiler_params=pltpu.CompilerParams(
                dimension_semantics=("parallel",),
                vmem_limit_bytes=vmem_limit),
            cost_estimate=cost,
        )

    try:
        out2 = _build(True)(x2, *consts)
    except Exception:
        # pl.Buffered / pipeline_mode unavailable on this jax version: fall back
        # to default double-buffered constants (numerically identical).
        out2 = _build(False)(x2, *consts)

    if HWp != HW:
        out2 = out2[:, :, :HW]
    return out2.reshape(N, oup, H, W)


def coord_att_ref(x, p, *, eps=1e-5):
    """Pure-JAX f32 reference mirroring the PyTorch forward (eval-mode BN)."""
    H = x.shape[2]
    x_h = jnp.mean(x, axis=3, keepdims=True)                      # (N,C,H,1)
    x_w = jnp.transpose(jnp.mean(x, axis=2, keepdims=True),
                        (0, 1, 3, 2))                             # (N,C,W,1)
    y = jnp.concatenate([x_h, x_w], axis=2)                       # (N,C,H+W,1)
    y = jnp.einsum("mc,nchw->nmhw", p["w1"], y) + p["b1"].reshape(1, -1, 1, 1)
    scale = (p["gamma"] / jnp.sqrt(p["var"] + eps)).reshape(1, -1, 1, 1)
    y = (y - p["mean"].reshape(1, -1, 1, 1)) * scale + p["beta"].reshape(1, -1, 1, 1)
    y = y * jnp.clip(y + 3.0, 0.0, 6.0) / 6.0
    y_h, y_w = y[:, :, :H, :], y[:, :, H:, :]
    y_w = jnp.transpose(y_w, (0, 1, 3, 2))
    a_h = jax.nn.sigmoid(jnp.einsum("om,nmhw->nohw", p["wh"], y_h)
                         + p["bh"].reshape(1, -1, 1, 1))
    a_w = jax.nn.sigmoid(jnp.einsum("om,nmhw->nohw", p["ww"], y_w)
                         + p["bw"].reshape(1, -1, 1, 1))
    return a_w * a_h


def make_params(inp, oup, reduction=32, seed=1):
    mip = max(8, inp // reduction)
    keys = jax.random.split(jax.random.PRNGKey(seed), 6)
    f32 = jnp.float32
    return {
        "w1":    0.3 * jax.random.normal(keys[0], (mip, inp), f32),
        "b1":    0.1 * jax.random.normal(keys[1], (mip, 1), f32),
        # BatchNorm2d running stats (inference mode).
        "gamma": (1.0 + 0.05 * jnp.arange(mip, dtype=f32)).reshape(mip, 1),
        "beta":  (0.02 * jnp.arange(mip, dtype=f32)).reshape(mip, 1),
        "mean":  (0.01 * jnp.arange(mip, dtype=f32)).reshape(mip, 1),
        "var":   (1.0 + 0.1 * jnp.arange(mip, dtype=f32)).reshape(mip, 1),
        "wh":    0.3 * jax.random.normal(keys[2], (oup, mip), f32),
        "bh":    0.1 * jax.random.normal(keys[3], (oup, 1), f32),
        "ww":    0.3 * jax.random.normal(keys[4], (oup, mip), f32),
        "bw":    0.1 * jax.random.normal(keys[5], (oup, 1), f32),
    }


if __name__ == "__main__":
    def _run_case(N, C, H, W, oup, seed):
        params = make_params(inp=C, oup=oup, reduction=32, seed=seed)
        x = jax.random.normal(jax.random.PRNGKey(0), (N, C, H, W), jnp.float32)
        out = jax.block_until_ready(coord_att(x, params))
        ref = coord_att_ref(x, params)
        assert out.shape == ref.shape, (out.shape, ref.shape)
        err = float(jnp.max(jnp.abs(out - ref)))
        # bf16 MXU operands (per perf review) -> bf16-level tolerance vs the
        # f32 reference.
        assert jnp.allclose(out, ref, atol=2e-2, rtol=2e-2), f"max abs err {err}"

    _run_case(2, 4, 16, 16, oup=4, seed=1)   # lane-aligned case (HW = 256)
    _run_case(2, 12, 7, 7, oup=6, seed=2)    # HW=49 -> padded to 128; odd C/oup

    print("KERNEL_OK")
</pallas_src>

<mosaic_0001>
module attributes {stable_mosaic.version = 11 : i64} {
  func.func @_coord_att_kernel(%arg0: i32, %arg1: memref<1x4x256xf32, #tpu.memory_space<vmem>>, %arg2: memref<16x4xbf16, #tpu.memory_space<vmem>>, %arg3: memref<16x1xf32, #tpu.memory_space<vmem>>, %arg4: memref<8x16xbf16, #tpu.memory_space<vmem>>, %arg5: memref<8x1xf32, #tpu.memory_space<vmem>>, %arg6: memref<256x32xbf16, #tpu.memory_space<vmem>>, %arg7: memref<1x32xf32, #tpu.memory_space<vmem>>, %arg8: memref<32x256xbf16, #tpu.memory_space<vmem>>, %arg9: memref<32x256xbf16, #tpu.memory_space<vmem>>, %arg10: memref<1x4x256xf32, #tpu.memory_space<vmem>>) attributes {dimension_semantics = [#tpu.dimension_semantics<parallel>], iteration_bounds = array<i64: 2>, scalar_prefetch = 0 : i64, scratch_operands = 0 : i64, tpu.core_type = #tpu.core_type<tc>, window_params = [{transform_indices = @transform_0, window_bounds = array<i64: 1, 4, 256>}, {pipeline_mode = #tpu.pipeline_mode<synchronous>, transform_indices = @transform_1, window_bounds = array<i64: 16, 4>}, {pipeline_mode = #tpu.pipeline_mode<synchronous>, transform_indices = @transform_2, window_bounds = array<i64: 16, 1>}, {pipeline_mode = #tpu.pipeline_mode<synchronous>, transform_indices = @transform_3, window_bounds = array<i64: 8, 16>}, {pipeline_mode = #tpu.pipeline_mode<synchronous>, transform_indices = @transform_4, window_bounds = array<i64: 8, 1>}, {pipeline_mode = #tpu.pipeline_mode<synchronous>, transform_indices = @transform_5, window_bounds = array<i64: 256, 32>}, {pipeline_mode = #tpu.pipeline_mode<synchronous>, transform_indices = @transform_6, window_bounds = array<i64: 1, 32>}, {pipeline_mode = #tpu.pipeline_mode<synchronous>, transform_indices = @transform_7, window_bounds = array<i64: 32, 256>}, {pipeline_mode = #tpu.pipeline_mode<synchronous>, transform_indices = @transform_8, window_bounds = array<i64: 32, 256>}, {transform_indices = @transform_9, window_bounds = array<i64: 1, 4, 256>}]} {
    %c0 = arith.constant 0 : index
    %c0_0 = arith.constant 0 : index
    %c0_1 = arith.constant 0 : index
    %0 = vector.load %arg1[%c0, %c0_0, %c0_1] : memref<1x4x256xf32, #tpu.memory_space<vmem>>, vector<1x4x256xf32>
    %1 = vector.shape_cast %0 : vector<1x4x256xf32> to vector<4x256xf32>
    %2 = arith.truncf %1 : vector<4x256xf32> to vector<4x256xbf16>
    %c0_2 = arith.constant 0 : index
    %c0_3 = arith.constant 0 : index
    %3 = vector.load %arg6[%c0_2, %c0_3] : memref<256x32xbf16, #tpu.memory_space<vmem>>, vector<256x32xbf16>
    %cst = arith.constant dense<0.000000e+00> : vector<4x32xf32>
    %4 = tpu.matmul %2, %3, %cst {dimension_numbers = #tpu.dot_dimension_numbers<[1], [0], [0], [1], [0, 0, 1, 1], [], []>} : vector<4x256xbf16>, vector<256x32xbf16>, vector<4x32xf32> -> vector<4x32xf32>
    %c0_4 = arith.constant 0 : index
    %c0_5 = arith.constant 0 : index
    %5 = vector.load %arg7[%c0_4, %c0_5] : memref<1x32xf32, #tpu.memory_space<vmem>>, vector<1x32xf32>
    %6 = vector.broadcast %5 : vector<1x32xf32> to vector<4x32xf32>
    %7 = arith.mulf %4, %6 : vector<4x32xf32>
    %c0_6 = arith.constant 0 : index
    %c0_7 = arith.constant 0 : index
    %8 = vector.load %arg2[%c0_6, %c0_7] : memref<16x4xbf16, #tpu.memory_space<vmem>>, vector<16x4xbf16>
    %9 = arith.truncf %7 : vector<4x32xf32> to vector<4x32xbf16>
    %cst_8 = arith.constant dense<0.000000e+00> : vector<16x32xf32>
    %10 = tpu.matmul %8, %9, %cst_8 {dimension_numbers = #tpu.dot_dimension_numbers<[1], [0], [0], [1], [0, 0, 1, 1], [], []>} : vector<16x4xbf16>, vector<4x32xbf16>, vector<16x32xf32> -> vector<16x32xf32>
    %c0_9 = arith.constant 0 : index
    %c0_10 = arith.constant 0 : index
    %11 = vector.load %arg3[%c0_9, %c0_10] : memref<16x1xf32, #tpu.memory_space<vmem>>, vector<16x1xf32>
    %12 = vector.broadcast %11 : vector<16x1xf32> to vector<16x32xf32>
    %13 = arith.addf %10, %12 : vector<16x32xf32>
    %cst_11 = arith.constant 3.000000e+00 : f32
    %14 = vector.broadcast %cst_11 : f32 to vector<16x32xf32>
    %15 = arith.addf %13, %14 : vector<16x32xf32>
    %cst_12 = arith.constant 0.000000e+00 : f32
    %cst_13 = arith.constant 6.000000e+00 : f32
    %16 = vector.broadcast %cst_12 : f32 to vector<16x32xf32>
    %17 = arith.maximumf %16, %15 : vector<16x32xf32>
    %18 = vector.broadcast %cst_13 : f32 to vector<16x32xf32>
    %19 = arith.minimumf %18, %17 : vector<16x32xf32>
    %20 = arith.mulf %13, %19 : vector<16x32xf32>
    %cst_14 = arith.constant 0.166666672 : f32
    %21 = vector.broadcast %cst_14 : f32 to vector<16x32xf32>
    %22 = arith.mulf %20, %21 : vector<16x32xf32>
    %c0_15 = arith.constant 0 : index
    %c0_16 = arith.constant 0 : index
    %23 = vector.load %arg4[%c0_15, %c0_16] : memref<8x16xbf16, #tpu.memory_space<vmem>>, vector<8x16xbf16>
    %24 = arith.truncf %22 : vector<16x32xf32> to vector<16x32xbf16>
    %cst_17 = arith.constant dense<0.000000e+00> : vector<8x32xf32>
    %25 = tpu.matmul %23, %24, %cst_17 {dimension_numbers = #tpu.dot_dimension_numbers<[1], [0], [0], [1], [0, 0, 1, 1], [], []>} : vector<8x16xbf16>, vector<16x32xbf16>, vector<8x32xf32> -> vector<8x32xf32>
    %c0_18 = arith.constant 0 : index
    %c0_19 = arith.constant 0 : index
    %26 = vector.load %arg5[%c0_18, %c0_19] : memref<8x1xf32, #tpu.memory_space<vmem>>, vector<8x1xf32>
    %27 = vector.broadcast %26 : vector<8x1xf32> to vector<8x32xf32>
    %28 = arith.addf %25, %27 : vector<8x32xf32>
    %29 = arith.negf %28 : vector<8x32xf32>
    %30 = math.exp %29 : vector<8x32xf32>
    %cst_20 = arith.constant 1.000000e+00 : f32
    %31 = vector.broadcast %cst_20 : f32 to vector<8x32xf32>
    %32 = arith.addf %31, %30 : vector<8x32xf32>
    %33 = arith.divf %31, %32 : vector<8x32xf32>
    %34 = vector.extract_strided_slice %33 {offsets = [0, 0], sizes = [4, 32], strides = [1, 1]} : vector<8x32xf32> to vector<4x32xf32>
    %35 = arith.truncf %34 : vector<4x32xf32> to vector<4x32xbf16>
    %36 = vector.extract_strided_slice %33 {offsets = [4, 0], sizes = [4, 32], strides = [1, 1]} : vector<8x32xf32> to vector<4x32xf32>
    %37 = arith.truncf %36 : vector<4x32xf32> to vector<4x32xbf16>
    %c0_21 = arith.constant 0 : index
    %c0_22 = arith.constant 0 : index
    %38 = vector.load %arg8[%c0_21, %c0_22] : memref<32x256xbf16, #tpu.memory_space<vmem>>, vector<32x256xbf16>
    %cst_23 = arith.constant dense<0.000000e+00> : vector<4x256xf32>
    %39 = tpu.matmul %35, %38, %cst_23 {dimension_numbers = #tpu.dot_dimension_numbers<[1], [0], [0], [1], [0, 0, 1, 1], [], []>} : vector<4x32xbf16>, vector<32x256xbf16>, vector<4x256xf32> -> vector<4x256xf32>
    %c0_24 = arith.constant 0 : index
    %c0_25 = arith.constant 0 : index
    %40 = vector.load %arg9[%c0_24, %c0_25] : memref<32x256xbf16, #tpu.memory_space<vmem>>, vector<32x256xbf16>
    %cst_26 = arith.constant dense<0.000000e+00> : vector<4x256xf32>
    %41 = tpu.matmul %37, %40, %cst_26 {dimension_numbers = #tpu.dot_dimension_numbers<[1], [0], [0], [1], [0, 0, 1, 1], [], []>} : vector<4x32xbf16>, vector<32x256xbf16>, vector<4x256xf32> -> vector<4x256xf32>
    %42 = arith.mulf %39, %41 : vector<4x256xf32>
    %c0_27 = arith.constant 0 : index
    %c0_28 = arith.constant 0 : index
    %c0_29 = arith.constant 0 : index
    %43 = vector.load %arg10[%c0_27, %c0_28, %c0_29] : memref<1x4x256xf32, #tpu.memory_space<vmem>>, vector<1x4x256xf32>
    %44 = vector.shape_cast %43 : vector<1x4x256xf32> to vector<4x256xf32>
    %45 = vector.shape_cast %42 : vector<4x256xf32> to vector<1x4x256xf32>
    tpu.vector_store %arg10[%c0_27, %c0_28, %c0_29], %45 {strides = array<i32>} : memref<1x4x256xf32, #tpu.memory_space<vmem>>, vector<1x4x256xf32>,
    return
  }
  func.func @transform_0(%arg0: i32) -> (i32, i32, i32) {
    %c0_i32 = arith.constant 0 : i32
    %c0_i32_0 = arith.constant 0 : i32
    %c0_i32_1 = arith.constant 0 : i32
    return %arg0, %c0_i32, %c0_i32_0 : i32, i32, i32
  }
  func.func @transform_1(%arg0: i32) -> (i32, i32) {
    %c0_i32 = arith.constant 0 : i32
    %c0_i32_0 = arith.constant 0 : i32
    %c0_i32_1 = arith.constant 0 : i32
    return %c0_i32, %c0_i32_0 : i32, i32
  }
  func.func @transform_2(%arg0: i32) -> (i32, i32) {
    %c0_i32 = arith.constant 0 : i32
    %c0_i32_0 = arith.constant 0 : i32
    %c0_i32_1 = arith.constant 0 : i32
    return %c0_i32, %c0_i32_0 : i32, i32
  }
  func.func @transform_3(%arg0: i32) -> (i32, i32) {
    %c0_i32 = arith.constant 0 : i32
    %c0_i32_0 = arith.constant 0 : i32
    %c0_i32_1 = arith.constant 0 : i32
    return %c0_i32, %c0_i32_0 : i32, i32
  }
  func.func @transform_4(%arg0: i32) -> (i32, i32) {
    %c0_i32 = arith.constant 0 : i32
    %c0_i32_0 = arith.constant 0 : i32
    %c0_i32_1 = arith.constant 0 : i32
    return %c0_i32, %c0_i32_0 : i32, i32
  }
  func.func @transform_5(%arg0: i32) -> (i32, i32) {
    %c0_i32 = arith.constant 0 : i32
    %c0_i32_0 = arith.constant 0 : i32
    %c0_i32_1 = arith.constant 0 : i32
    return %c0_i32, %c0_i32_0 : i32, i32
  }
  func.func @transform_6(%arg0: i32) -> (i32, i32) {
    %c0_i32 = arith.constant 0 : i32
    %c0_i32_0 = arith.constant 0 : i32
    %c0_i32_1 = arith.constant 0 : i32
    return %c0_i32, %c0_i32_0 : i32, i32
  }
  func.func @transform_7(%arg0: i32) -> (i32, i32) {
    %c0_i32 = arith.constant 0 : i32
    %c0_i32_0 = arith.constant 0 : i32
    %c0_i32_1 = arith.constant 0 : i32
    return %c0_i32, %c0_i32_0 : i32, i32
  }
  func.func @transform_8(%arg0: i32) -> (i32, i32) {
    %c0_i32 = arith.constant 0 : i32
    %c0_i32_0 = arith.constant 0 : i32
    %c0_i32_1 = arith.constant 0 : i32
    return %c0_i32, %c0_i32_0 : i32, i32
  }
  func.func @transform_9(%arg0: i32) -> (i32, i32, i32) {
    %c0_i32 = arith.constant 0 : i32
    %c0_i32_0 = arith.constant 0 : i32
    %c0_i32_1 = arith.constant 0 : i32
    return %arg0, %c0_i32, %c0_i32_0 : i32, i32, i32
  }
}

module attributes {stable_mosaic.version = 11 : i64} {
  func.func @_coord_att_kernel(%arg0: i32, %arg1: memref<1x4x256xf32, #tpu.memory_space<vmem>>, %arg2: memref<16x4xbf16, #tpu.memory_space<vmem>>, %arg3: memref<16x1xf32, #tpu.memory_space<vmem>>, %arg4: memref<8x16xbf16, #tpu.memory_space<vmem>>, %arg5: memref<8x1xf32, #tpu.memory_space<vmem>>, %arg6: memref<256x32xbf16, #tpu.memory_space<vmem>>, %arg7: memref<1x32xf32, #tpu.memory_space<vmem>>, %arg8: memref<32x256xbf16, #tpu.memory_space<vmem>>, %arg9: memref<32x256xbf16, #tpu.memory_space<vmem>>, %arg10: memref<1x4x256xf32, #tpu.memory_space<vmem>>) attributes {dimension_semantics = [#tpu.dimension_semantics<parallel>], iteration_bounds = array<i64: 2>, scalar_prefetch = 0 : i64, scratch_operands = 0 : i64, tpu.core_type = #tpu.core_type<tc>, window_params = [{transform_indices = @transform_0, window_bounds = array<i64: 1, 4, 256>}, {pipeline_mode = #tpu.pipeline_mode<synchronous>, transform_indices = @transform_1, window_bounds = array<i64: 16, 4>}, {pipeline_mode = #tpu.pipeline_mode<synchronous>, transform_indices = @transform_2, window_bounds = array<i64: 16, 1>}, {pipeline_mode = #tpu.pipeline_mode<synchronous>, transform_indices = @transform_3, window_bounds = array<i64: 8, 16>}, {pipeline_mode = #tpu.pipeline_mode<synchronous>, transform_indices = @transform_4, window_bounds = array<i64: 8, 1>}, {pipeline_mode = #tpu.pipeline_mode<synchronous>, transform_indices = @transform_5, window_bounds = array<i64: 256, 32>}, {pipeline_mode = #tpu.pipeline_mode<synchronous>, transform_indices = @transform_6, window_bounds = array<i64: 1, 32>}, {pipeline_mode = #tpu.pipeline_mode<synchronous>, transform_indices = @transform_7, window_bounds = array<i64: 32, 256>}, {pipeline_mode = #tpu.pipeline_mode<synchronous>, transform_indices = @transform_8, window_bounds = array<i64: 32, 256>}, {transform_indices = @transform_9, window_bounds = array<i64: 1, 4, 256>}]} {
    %c0 = arith.constant 0 : index
    %c0_0 = arith.constant 0 : index
    %c0_1 = arith.constant 0 : index
    %0 = vector.load %arg1[%c0, %c0_0, %c0_1] : memref<1x4x256xf32, #tpu.memory_space<vmem>>, vector<1x4x256xf32>
    %1 = vector.shape_cast %0 : vector<1x4x256xf32> to vector<4x256xf32>
    %2 = arith.truncf %1 : vector<4x256xf32> to vector<4x256xbf16>
    %c0_2 = arith.constant 0 : index
    %c0_3 = arith.constant 0 : index
    %3 = vector.load %arg6[%c0_2, %c0_3] : memref<256x32xbf16, #tpu.memory_space<vmem>>, vector<256x32xbf16>
    %cst = arith.constant dense<0.000000e+00> : vector<4x32xf32>
    %4 = tpu.matmul %2, %3, %cst {dimension_numbers = #tpu.dot_dimension_numbers<[1], [0], [0], [1], [0, 0, 1, 1], [], []>} : vector<4x256xbf16>, vector<256x32xbf16>, vector<4x32xf32> -> vector<4x32xf32>
    %c0_4 = arith.constant 0 : index
    %c0_5 = arith.constant 0 : index
    %5 = vector.load %arg7[%c0_4, %c0_5] : memref<1x32xf32, #tpu.memory_space<vmem>>, vector<1x32xf32>
    %6 = vector.broadcast %5 : vector<1x32xf32> to vector<4x32xf32>
    %7 = arith.mulf %4, %6 : vector<4x32xf32>
    %c0_6 = arith.constant 0 : index
    %c0_7 = arith.constant 0 : index
    %8 = vector.load %arg2[%c0_6, %c0_7] : memref<16x4xbf16, #tpu.memory_space<vmem>>, vector<16x4xbf16>
    %9 = arith.truncf %7 : vector<4x32xf32> to vector<4x32xbf16>
    %cst_8 = arith.constant dense<0.000000e+00> : vector<16x32xf32>
    %10 = tpu.matmul %8, %9, %cst_8 {dimension_numbers = #tpu.dot_dimension_numbers<[1], [0], [0], [1], [0, 0, 1, 1], [], []>} : vector<16x4xbf16>, vector<4x32xbf16>, vector<16x32xf32> -> vector<16x32xf32>
    %c0_9 = arith.constant 0 : index
    %c0_10 = arith.constant 0 : index
    %11 = vector.load %arg3[%c0_9, %c0_10] : memref<16x1xf32, #tpu.memory_space<vmem>>, vector<16x1xf32>
    %12 = vector.broadcast %11 : vector<16x1xf32> to vector<16x32xf32>
    %13 = arith.addf %10, %12 : vector<16x32xf32>
    %cst_11 = arith.constant 3.000000e+00 : f32
    %14 = vector.broadcast %cst_11 : f32 to vector<16x32xf32>
    %15 = arith.addf %13, %14 : vector<16x32xf32>
    %cst_12 = arith.constant 0.000000e+00 : f32
    %cst_13 = arith.constant 6.000000e+00 : f32
    %16 = vector.broadcast %cst_12 : f32 to vector<16x32xf32>
    %17 = arith.maximumf %16, %15 : vector<16x32xf32>
    %18 = vector.broadcast %cst_13 : f32 to vector<16x32xf32>
    %19 = arith.minimumf %18, %17 : vector<16x32xf32>
    %20 = arith.mulf %13, %19 : vector<16x32xf32>
    %cst_14 = arith.constant 0.166666672 : f32
    %21 = vector.broadcast %cst_14 : f32 to vector<16x32xf32>
    %22 = arith.mulf %20, %21 : vector<16x32xf32>
    %c0_15 = arith.constant 0 : index
    %c0_16 = arith.constant 0 : index
    %23 = vector.load %arg4[%c0_15, %c0_16] : memref<8x16xbf16, #tpu.memory_space<vmem>>, vector<8x16xbf16>
    %24 = arith.truncf %22 : vector<16x32xf32> to vector<16x32xbf16>
    %cst_17 = arith.constant dense<0.000000e+00> : vector<8x32xf32>
    %25 = tpu.matmul %23, %24, %cst_17 {dimension_numbers = #tpu.dot_dimension_numbers<[1], [0], [0], [1], [0, 0, 1, 1], [], []>} : vector<8x16xbf16>, vector<16x32xbf16>, vector<8x32xf32> -> vector<8x32xf32>
    %c0_18 = arith.constant 0 : index
    %c0_19 = arith.constant 0 : index
    %26 = vector.load %arg5[%c0_18, %c0_19] : memref<8x1xf32, #tpu.memory_space<vmem>>, vector<8x1xf32>
    %27 = vector.broadcast %26 : vector<8x1xf32> to vector<8x32xf32>
    %28 = arith.addf %25, %27 : vector<8x32xf32>
    %29 = arith.negf %28 : vector<8x32xf32>
    %30 = math.exp %29 : vector<8x32xf32>
    %cst_20 = arith.constant 1.000000e+00 : f32
    %31 = vector.broadcast %cst_20 : f32 to vector<8x32xf32>
    %32 = arith.addf %31, %30 : vector<8x32xf32>
    %33 = arith.divf %31, %32 : vector<8x32xf32>
    %34 = vector.extract_strided_slice %33 {offsets = [0, 0], sizes = [4, 32], strides = [1, 1]} : vector<8x32xf32> to vector<4x32xf32>
    %35 = arith.truncf %34 : vector<4x32xf32> to vector<4x32xbf16>
    %36 = vector.extract_strided_slice %33 {offsets = [4, 0], sizes = [4, 32], strides = [1, 1]} : vector<8x32xf32> to vector<4x32xf32>
    %37 = arith.truncf %36 : vector<4x32xf32> to vector<4x32xbf16>
    %c0_21 = arith.constant 0 : index
    %c0_22 = arith.constant 0 : index
    %38 = vector.load %arg8[%c0_21, %c0_22] : memref<32x256xbf16, #tpu.memory_space<vmem>>, vector<32x256xbf16>
    %cst_23 = arith.constant dense<0.000000e+00> : vector<4x256xf32>
    %39 = tpu.matmul %35, %38, %cst_23 {dimension_numbers = #tpu.dot_dimension_numbers<[1], [0], [0], [1], [0, 0, 1, 1], [], []>} : vector<4x32xbf16>, vector<32x256xbf16>, vector<4x256xf32> -> vector<4x256xf32>
    %c0_24 = arith.constant 0 : index
    %c0_25 = arith.constant 0 : index
    %40 = vector.load %arg9[%c0_24, %c0_25] : memref<32x256xbf16, #tpu.memory_space<vmem>>, vector<32x256xbf16>
    %cst_26 = arith.constant dense<0.000000e+00> : vector<4x256xf32>
    %41 = tpu.matmul %37, %40, %cst_26 {dimension_numbers = #tpu.dot_dimension_numbers<[1], [0], [0], [1], [0, 0, 1, 1], [], []>} : vector<4x32xbf16>, vector<32x256xbf16>, vector<4x256xf32> -> vector<4x256xf32>
    %42 = arith.mulf %39, %41 : vector<4x256xf32>
    %c0_27 = arith.constant 0 : index
    %c0_28 = arith.constant 0 : index
    %c0_29 = arith.constant 0 : index
    %43 = vector.load %arg10[%c0_27, %c0_28, %c0_29] : memref<1x4x256xf32, #tpu.memory_space<vmem>>, vector<1x4x256xf32>
    %44 = vector.shape_cast %43 : vector<1x4x256xf32> to vector<4x256xf32>
    %45 = vector.shape_cast %42 : vector<4x256xf32> to vector<1x4x256xf32>
    tpu.vector_store %arg10[%c0_27, %c0_28, %c0_29], %45 {strides = array<i32>} : memref<1x4x256xf32, #tpu.memory_space<vmem>>, vector<1x4x256xf32>,
    return
  }
  func.func @transform_0(%arg0: i32) -> (i32, i32, i32) {
    %c0_i32 = arith.constant 0 : i32
    %c0_i32_0 = arith.constant 0 : i32
    %c0_i32_1 = arith.constant 0 : i32
    return %arg0, %c0_i32, %c0_i32_0 : i32, i32, i32
  }
  func.func @transform_1(%arg0: i32) -> (i32, i32) {
    %c0_i32 = arith.constant 0 : i32
    %c0_i32_0 = arith.constant 0 : i32
    %c0_i32_1 = arith.constant 0 : i32
    return %c0_i32, %c0_i32_0 : i32, i32
  }
  func.func @transform_2(%arg0: i32) -> (i32, i32) {
    %c0_i32 = arith.constant 0 : i32
    %c0_i32_0 = arith.constant 0 : i32
    %c0_i32_1 = arith.constant 0 : i32
    return %c0_i32, %c0_i32_0 : i32, i32
  }
  func.func @transform_3(%arg0: i32) -> (i32, i32) {
    %c0_i32 = arith.constant 0 : i32
    %c0_i32_0 = arith.constant 0 : i32
    %c0_i32_1 = arith.constant 0 : i32
    return %c0_i32, %c0_i32_0 : i32, i32
  }
  func.func @transform_4(%arg0: i32) -> (i32, i32) {
    %c0_i32 = arith.constant 0 : i32
    %c0_i32_0 = arith.constant 0 : i32
    %c0_i32_1 = arith.constant 0 : i32
    return %c0_i32, %c0_i32_0 : i32, i32
  }
  func.func @transform_5(%arg0: i32) -> (i32, i32) {
    %c0_i32 = arith.constant 0 : i32
    %c0_i32_0 = arith.constant 0 : i32
    %c0_i32_1 = arith.constant 0 : i32
    return %c0_i32, %c0_i32_0 : i32, i32
  }
  func.func @transform_6(%arg0: i32) -> (i32, i32) {
    %c0_i32 = arith.constant 0 : i32
    %c0_i32_0 = arith.constant 0 : i32
    %c0_i32_1 = arith.constant 0 : i32
    return %c0_i32, %c0_i32_0 : i32, i32
  }
  func.func @transform_7(%arg0: i32) -> (i32, i32) {
    %c0_i32 = arith.constant 0 : i32
    %c0_i32_0 = arith.constant 0 : i32
    %c0_i32_1 = arith.constant 0 : i32
    return %c0_i32, %c0_i32_0 : i32, i32
  }
  func.func @transform_8(%arg0: i32) -> (i32, i32) {
    %c0_i32 = arith.constant 0 : i32
    %c0_i32_0 = arith.constant 0 : i32
    %c0_i32_1 = arith.constant 0 : i32
    return %c0_i32, %c0_i32_0 : i32, i32
  }
  func.func @transform_9(%arg0: i32) -> (i32, i32, i32) {
    %c0_i32 = arith.constant 0 : i32
    %c0_i32_0 = arith.constant 0 : i32
    %c0_i32_1 = arith.constant 0 : i32
    return %arg0, %c0_i32, %c0_i32_0 : i32, i32, i32
  }
}

</mosaic_0001>

<llo_original>
// kernel: tpu_custom_call.1
$region0: #{tpu_custom_call.1}
  #allocation0 [shape = 'u32[]', space=smem, size = 0x4, offset = 0x4, fixed_abs, tag = 'smem constant byte address 0x4 - core index']
  #allocation1 [shape = 'u32[144,128]{1,0:T(1,128)}', space=vmem, size = 0x12000, scoped, tag = 'internal scratch']
  %s0 = inlined_call_operand.vmem [shape: f32[2,4,256], index: 0, kind: input, shape index: {}]
  %s1 = inlined_call_operand.vmem [shape: bf16[16,4], index: 1, kind: input, shape index: {}]
  %s2 = inlined_call_operand.vmem [shape: f32[16,1], index: 2, kind: input, shape index: {}]
  %s3 = inlined_call_operand.vmem [shape: bf16[8,16], index: 3, kind: input, shape index: {}]
  %s4 = inlined_call_operand.vmem [shape: f32[8,1], index: 4, kind: input, shape index: {}]
  %s5 = inlined_call_operand.vmem [shape: bf16[256,32], index: 5, kind: input, shape index: {}]
  %s6 = inlined_call_operand.vmem [shape: f32[1,32], index: 6, kind: input, shape index: {}]
  %s7 = inlined_call_operand.vmem [shape: bf16[32,256], index: 7, kind: input, shape index: {}]
  %s8 = inlined_call_operand.vmem [shape: bf16[32,256], index: 8, kind: input, shape index: {}]
  %s9 = inlined_call_operand.hbm [shape: f32[2,4,256], index: 9, kind: output, shape index: {}]
  %s10 = sld [smem:[#allocation0]]
  $region69: #{tpu_custom_call.1} parent=0
    _
  %s12 = ssub.s32 1, %s10
  %s13 = scalar_select 0, %s12, %s10
  $region1: #{tpu_custom_call.1} parent=0
    #allocation2 [shape = 'u8[8192]{0}', space=vmem, size = 0x2000, scoped, tag = 'output window, operand 0']
    #allocation3 [shape = 's32[2]{0}', space=sflag, size = 0x8, scoped, tag = 'scoped memory for tpu_custom_call.1']
    %14 = vsyncpa [#allocation3], 0
    %s15 = scalar_lea.sflag [#allocation3], 1
    %16 = vsyncpa %s15, 0
    loop: start=0, step=1, limit=4
    $region2: #{tpu_custom_call.1} parent=1 // loop_pre_header
      _
    $region3: #{tpu_custom_call.1} parent=1 // loop_header
      %s18 = sphi 0, %s22
      %p19 = scmp.ge.s32.totalorder %s18, 4
      %s28 = sphi 0, %s30
      %s31 = sphi 0, %s28
      %s32 = sphi 0, %s31
      %s48 = sphi 0, %s32
      %s52 = sphi 0, %s52
      %s54 = sphi 0, %s52
      %s55 = sphi 0, %s54
      %s69 = sphi 0, %s55
      %s73 = sphi 0, %s73
      %s75 = sphi 0, %s73
      %s76 = sphi 0, %s75
      %s90 = sphi 0, %s76
      %s94 = sphi 0, %s94
      %s96 = sphi 0, %s94
      %s97 = sphi 0, %s96
      %s111 = sphi 0, %s97
      %s115 = sphi 0, %s115
      %s117 = sphi 0, %s115
      %s118 = sphi 0, %s117
      %s132 = sphi 0, %s118
      %s136 = sphi 0, %s136
      %s138 = sphi 0, %s136
      %s139 = sphi 0, %s138
      %s153 = sphi 0, %s139
      %s157 = sphi 0, %s157
      %s159 = sphi 0, %s157
      %s160 = sphi 0, %s159
      %s174 = sphi 0, %s160
      %s178 = sphi 0, %s178
      %s180 = sphi 0, %s178
      %s181 = sphi 0, %s180
      %s195 = sphi 0, %s181
      %s199 = sphi 0, %s199
      %s201 = sphi 0, %s199
      %s202 = sphi 0, %s201
      %s216 = sphi 0, %s202
      %s222 = sphi 0, %s224
      %s225 = sphi 0, %s222
      %s226 = sphi 0, %s225
      %s242 = sphi 0, %s226
    $region4: #{tpu_custom_call.1} parent=1 // loop_header_branch
      %21 = sbr.rel (%p19) target = $region8
    $region5: #{tpu_custom_call.1} parent=1 // loop_body
      %s23 = ssub.s32 %s18, 1
      %s24 = ssub.s32 %s18, 2
      %s25 = sadd.s32 %s18, 1
      %s26 = ssub.s32 %s18, %s25
      %p27 = scmp.eq.s32.totalorder %s26, 0
      %s29 = sadd.s32 %s28, 1
      %s30 = scalar_select %p27, %s28, %s29
      %p33 = pneg %p27
      %p34 = scmp.eq.s32.totalorder %s18, 1
      %p35 = por %p33, %p34
      %p36 = scmp.ne.s32.totalorder %s28, %s31
      %p37 = scmp.eq.s32.totalorder %s18, 0
      %p38 = por %p36, %p37
      %p39 = scmp.ne.s32.totalorder %s28, %s31
      %p40 = scmp.eq.s32.totalorder %s23, 1
      %p41 = por %p39, %p40
      %p42 = scmp.ne.s32.totalorder %s31, %s32
      %p43 = scmp.eq.s32.totalorder %s23, 0
      %p44 = por %p42, %p43
      %p45 = scmp.ne.s32.totalorder %s31, %s32
      %p46 = scmp.eq.s32.totalorder %s24, 1
      %p47 = por %p45, %p46
      %p49 = scmp.ne.s32.totalorder %s32, %s48
      %p50 = scmp.eq.s32.totalorder %s24, 0
      %p51 = por %p49, %p50
      %s53 = sadd.s32 %s52, 1
      %p56 = scmp.eq.s32.totalorder %s18, 1
      %p57 = scmp.ne.s32.totalorder %s52, %s54
      %p58 = scmp.eq.s32.totalorder %s18, 0
      %p59 = por %p57, %p58
      %p60 = scmp.ne.s32.totalorder %s52, %s54
      %p61 = scmp.eq.s32.totalorder %s23, 1
      %p62 = por %p60, %p61
      %p63 = scmp.ne.s32.totalorder %s54, %s55
      %p64 = scmp.eq.s32.totalorder %s23, 0
      %p65 = por %p63, %p64
      %p66 = scmp.ne.s32.totalorder %s54, %s55
      %p67 = scmp.eq.s32.totalorder %s24, 1
      %p68 = por %p66, %p67
      %p70 = scmp.ne.s32.totalorder %s55, %s69
      %p71 = scmp.eq.s32.totalorder %s24, 0
      %p72 = por %p70, %p71
      %s74 = sadd.s32 %s73, 1
      %p77 = scmp.eq.s32.totalorder %s18, 1
      %p78 = scmp.ne.s32.totalorder %s73, %s75
      %p79 = scmp.eq.s32.totalorder %s18, 0
      %p80 = por %p78, %p79
      %p81 = scmp.ne.s32.totalorder %s73, %s75
      %p82 = scmp.eq.s32.totalorder %s23, 1
      %p83 = por %p81, %p82
      %p84 = scmp.ne.s32.totalorder %s75, %s76
      %p85 = scmp.eq.s32.totalorder %s23, 0
      %p86 = por %p84, %p85
      %p87 = scmp.ne.s32.totalorder %s75, %s76
      %p88 = scmp.eq.s32.totalorder %s24, 1
      %p89 = por %p87, %p88
      %p91 = scmp.ne.s32.totalorder %s76, %s90
      %p92 = scmp.eq.s32.totalorder %s24, 0
      %p93 = por %p91, %p92
      %s95 = sadd.s32 %s94, 1
      %p98 = scmp.eq.s32.totalorder %s18, 1
      %p99 = scmp.ne.s32.totalorder %s94, %s96
      %p100 = scmp.eq.s32.totalorder %s18, 0
      %p101 = por %p99, %p100
      %p102 = scmp.ne.s32.totalorder %s94, %s96
      %p103 = scmp.eq.s32.totalorder %s23, 1
      %p104 = por %p102, %p103
      %p105 = scmp.ne.s32.totalorder %s96, %s97
      %p106 = scmp.eq.s32.totalorder %s23, 0
      %p107 = por %p105, %p106
      %p108 = scmp.ne.s32.totalorder %s96, %s97
      %p109 = scmp.eq.s32.totalorder %s24, 1
      %p110 = por %p108, %p109
      %p112 = scmp.ne.s32.totalorder %s97, %s111
      %p113 = scmp.eq.s32.totalorder %s24, 0
      %p114 = por %p112, %p113
      %s116 = sadd.s32 %s115, 1
      %p119 = scmp.eq.s32.totalorder %s18, 1
      %p120 = scmp.ne.s32.totalorder %s115, %s117
      %p121 = scmp.eq.s32.totalorder %s18, 0
      %p122 = por %p120, %p121
      %p123 = scmp.ne.s32.totalorder %s115, %s117
      %p124 = scmp.eq.s32.totalorder %s23, 1
      %p125 = por %p123, %p124
      %p126 = scmp.ne.s32.totalorder %s117, %s118
      %p127 = scmp.eq.s32.totalorder %s23, 0
      %p128 = por %p126, %p127
      %p129 = scmp.ne.s32.totalorder %s117, %s118
      %p130 = scmp.eq.s32.totalorder %s24, 1
      %p131 = por %p129, %p130
      %p133 = scmp.ne.s32.totalorder %s118, %s132
      %p134 = scmp.eq.s32.totalorder %s24, 0
      %p135 = por %p133, %p134
      %s137 = sadd.s32 %s136, 1
      %p140 = scmp.eq.s32.totalorder %s18, 1
      %p141 = scmp.ne.s32.totalorder %s136, %s138
      %p142 = scmp.eq.s32.totalorder %s18, 0
      %p143 = por %p141, %p142
      %p144 = scmp.ne.s32.totalorder %s136, %s138
      %p145 = scmp.eq.s32.totalorder %s23, 1
      %p146 = por %p144, %p145
      %p147 = scmp.ne.s32.totalorder %s138, %s139
      %p148 = scmp.eq.s32.totalorder %s23, 0
      %p149 = por %p147, %p148
      %p150 = scmp.ne.s32.totalorder %s138, %s139
      %p151 = scmp.eq.s32.totalorder %s24, 1
      %p152 = por %p150, %p151
      %p154 = scmp.ne.s32.totalorder %s139, %s153
      %p155 = scmp.eq.s32.totalorder %s24, 0
      %p156 = por %p154, %p155
      %s158 = sadd.s32 %s157, 1
      %p161 = scmp.eq.s32.totalorder %s18, 1
      %p162 = scmp.ne.s32.totalorder %s157, %s159
      %p163 = scmp.eq.s32.totalorder %s18, 0
      %p164 = por %p162, %p163
      %p165 = scmp.ne.s32.totalorder %s157, %s159
      %p166 = scmp.eq.s32.totalorder %s23, 1
      %p167 = por %p165, %p166
      %p168 = scmp.ne.s32.totalorder %s159, %s160
      %p169 = scmp.eq.s32.totalorder %s23, 0
      %p170 = por %p168, %p169
      %p171 = scmp.ne.s32.totalorder %s159, %s160
      %p172 = scmp.eq.s32.totalorder %s24, 1
      %p173 = por %p171, %p172
      %p175 = scmp.ne.s32.totalorder %s160, %s174
      %p176 = scmp.eq.s32.totalorder %s24, 0
      %p177 = por %p175, %p176
      %s179 = sadd.s32 %s178, 1
      %p182 = scmp.eq.s32.totalorder %s18, 1
      %p183 = scmp.ne.s32.totalorder %s178, %s180
      %p184 = scmp.eq.s32.totalorder %s18, 0
      %p185 = por %p183, %p184
      %p186 = scmp.ne.s32.totalorder %s178, %s180
      %p187 = scmp.eq.s32.totalorder %s23, 1
      %p188 = por %p186, %p187
      %p189 = scmp.ne.s32.totalorder %s180, %s181
      %p190 = scmp.eq.s32.totalorder %s23, 0
      %p191 = por %p189, %p190
      %p192 = scmp.ne.s32.totalorder %s180, %s181
      %p193 = scmp.eq.s32.totalorder %s24, 1
      %p194 = por %p192, %p193
      %p196 = scmp.ne.s32.totalorder %s181, %s195
      %p197 = scmp.eq.s32.totalorder %s24, 0
      %p198 = por %p196, %p197
      %s200 = sadd.s32 %s199, 1
      %p203 = scmp.eq.s32.totalorder %s18, 1
      %p204 = scmp.ne.s32.totalorder %s199, %s201
      %p205 = scmp.eq.s32.totalorder %s18, 0
      %p206 = por %p204, %p205
      %p207 = scmp.ne.s32.totalorder %s199, %s201
      %p208 = scmp.eq.s32.totalorder %s23, 1
      %p209 = por %p207, %p208
      %p210 = scmp.ne.s32.totalorder %s201, %s202
      %p211 = scmp.eq.s32.totalorder %s23, 0
      %p212 = por %p210, %p211
      %p213 = scmp.ne.s32.totalorder %s201, %s202
      %p214 = scmp.eq.s32.totalorder %s24, 1
      %p215 = por %p213, %p214
      %p217 = scmp.ne.s32.totalorder %s202, %s216
      %p218 = scmp.eq.s32.totalorder %s24, 0
      %p219 = por %p217, %p218
      %s220 = ssub.s32 %s18, %s25
      %p221 = scmp.eq.s32.totalorder %s220, 0
      %s223 = sadd.s32 %s222, 1
      %s224 = scalar_select %p221, %s222, %s223
      %p227 = pneg %p221
      %p228 = scmp.eq.s32.totalorder %s18, 1
      %p229 = por %p227, %p228
      %p230 = scmp.ne.s32.totalorder %s222, %s225
      %p231 = scmp.eq.s32.totalorder %s18, 0
      %p232 = por %p230, %p231
      %p233 = scmp.ne.s32.totalorder %s222, %s225
      %p234 = scmp.eq.s32.totalorder %s23, 1
      %p235 = por %p233, %p234
      %p236 = scmp.ne.s32.totalorder %s225, %s226
      %p237 = scmp.eq.s32.totalorder %s23, 0
      %p238 = por %p236, %p237
      %p239 = scmp.ne.s32.totalorder %s225, %s226
      %p240 = scmp.eq.s32.totalorder %s24, 1
      %p241 = por %p239, %p240
      %p243 = scmp.ne.s32.totalorder %s226, %s242
      %p244 = scmp.eq.s32.totalorder %s24, 0
      %p245 = por %p243, %p244
      %p246 = scmp.le.s32.totalorder 1, %s18
      %p247 = scmp.lt.s32.totalorder %s18, 3
      %p248 = pnand %p246, %p247
      %p249 = pneg %p248
      // Predicated region
      $region9: #{tpu_custom_call.1} parent=5 // pred_check
        _
      $region10: #{tpu_custom_call.1} parent=5 // pred_check_branch
        %251 = sbr.rel (%p248) target = $region12
      $region11: #{tpu_custom_call.1} parent=5 // pred_region
        %s252 = ssub.s32 %s18, 1
        // Predicated region
        $region13: #{tpu_custom_call.1} parent=11 // pred_check
          %p253 = pneg %p65
        $region14: #{tpu_custom_call.1} parent=11 // pred_check_branch
          %255 = sbr.rel (%p253) target = $region16
        $region15: #{tpu_custom_call.1} parent=11 // pred_region
          _
        $region16: #{tpu_custom_call.1} parent=11 // pred_fallthru
          _
        // Predicated region
        $region17: #{tpu_custom_call.1} parent=11 // pred_check
          %p256 = pneg %p86
        $region18: #{tpu_custom_call.1} parent=11 // pred_check_branch
          %258 = sbr.rel (%p256) target = $region20
        $region19: #{tpu_custom_call.1} parent=11 // pred_region
          _
        $region20: #{tpu_custom_call.1} parent=11 // pred_fallthru
          _
        // Predicated region
        $region21: #{tpu_custom_call.1} parent=11 // pred_check
          %p259 = pneg %p107
        $region22: #{tpu_custom_call.1} parent=11 // pred_check_branch
          %261 = sbr.rel (%p259) target = $region24
        $region23: #{tpu_custom_call.1} parent=11 // pred_region
          _
        $region24: #{tpu_custom_call.1} parent=11 // pred_fallthru
          _
        // Predicated region
        $region25: #{tpu_custom_call.1} parent=11 // pred_check
          %p262 = pneg %p128
        $region26: #{tpu_custom_call.1} parent=11 // pred_check_branch
          %264 = sbr.rel (%p262) target = $region28
        $region27: #{tpu_custom_call.1} parent=11 // pred_region
          _
        $region28: #{tpu_custom_call.1} parent=11 // pred_fallthru
          _
        // Predicated region
        $region29: #{tpu_custom_call.1} parent=11 // pred_check
          %p265 = pneg %p149
        $region30: #{tpu_custom_call.1} parent=11 // pred_check_branch
          %267 = sbr.rel (%p265) target = $region32
        $region31: #{tpu_custom_call.1} parent=11 // pred_region
          _
        $region32: #{tpu_custom_call.1} parent=11 // pred_fallthru
          _
        // Predicated region
        $region33: #{tpu_custom_call.1} parent=11 // pred_check
          %p268 = pneg %p170
        $region34: #{tpu_custom_call.1} parent=11 // pred_check_branch
          %270 = sbr.rel (%p268) target = $region36
        $region35: #{tpu_custom_call.1} parent=11 // pred_region
          _
        $region36: #{tpu_custom_call.1} parent=11 // pred_fallthru
          _
        // Predicated region
        $region37: #{tpu_custom_call.1} parent=11 // pred_check
          %p271 = pneg %p191
        $region38: #{tpu_custom_call.1} parent=11 // pred_check_branch
          %273 = sbr.rel (%p271) target = $region40
        $region39: #{tpu_custom_call.1} parent=11 // pred_region
          _
        $region40: #{tpu_custom_call.1} parent=11 // pred_fallthru
          _
        // Predicated region
        $region41: #{tpu_custom_call.1} parent=11 // pred_check
          %p274 = pneg %p212
        $region42: #{tpu_custom_call.1} parent=11 // pred_check_branch
          %276 = sbr.rel (%p274) target = $region44
        $region43: #{tpu_custom_call.1} parent=11 // pred_region
          _
        $region44: #{tpu_custom_call.1} parent=11 // pred_fallthru
          _
      $region12: #{tpu_custom_call.1} parent=5 // pred_fallthru
        _
      %p277 = scmp.lt.s32.totalorder %s18, 2
      // Predicated region
      $region45: #{tpu_custom_call.1} parent=5 // pred_check
        %p278 = pneg %p277
      $region46: #{tpu_custom_call.1} parent=5 // pred_check_branch
        %280 = sbr.rel (%p278) target = $region48
      $region47: #{tpu_custom_call.1} parent=5 // pred_region
        // Predicated region
        $region49: #{tpu_custom_call.1} parent=47 // pred_check
          %p281 = pneg %p38
        $region50: #{tpu_custom_call.1} parent=47 // pred_check_branch
          %283 = sbr.rel (%p281) target = $region52
        $region51: #{tpu_custom_call.1} parent=47 // pred_region
          %p284 = scmp.lt.s32.totalorder %s18, 1
          %s285 = scalar_select %p284, %s18, 1
          %s286 = smul.addr %s285, 2
          %s287 = smul.addr %s286, 4
          %s288 = scalar_lea.vmem %s0, %s287
        $region52: #{tpu_custom_call.1} parent=47 // pred_fallthru
          _
      $region48: #{tpu_custom_call.1} parent=5 // pred_fallthru
        _
      %p289 = scmp.le.s32.totalorder 1, %s18
      %p290 = scmp.lt.s32.totalorder %s18, 3
      %p291 = pnand %p289, %p290
      %p292 = pneg %p291
      // Predicated region
      $region53: #{tpu_custom_call.1} parent=5 // pred_check
        _
      $region54: #{tpu_custom_call.1} parent=5 // pred_check_branch
        %294 = sbr.rel (%p291) target = $region56
      $region55: #{tpu_custom_call.1} parent=5 // pred_region
        %s295 = ssub.s32 %s18, 1
        %p296 = scmp.lt.s32.totalorder %s23, 1
        %s297 = scalar_select %p296, %s23, 1
        %s298 = smul.addr %s297, 2
        %s299 = smul.addr %s298, 4
        %s300 = scalar_lea.vmem %s0, %s299
        %p301 = pneg %p44
        %p302 = pneg %p41
        %p303 = pneg %p65
        %p304 = pneg %p62
        %p305 = pneg %p86
        %p306 = pneg %p83
        %p307 = pneg %p107
        %p308 = pneg %p104
        %p309 = pneg %p128
        %p310 = pneg %p125
        %p311 = pneg %p149
        %p312 = pneg %p146
        %p313 = pneg %p170
        %p314 = pneg %p167
        %p315 = pneg %p191
        %p316 = pneg %p188
        %p317 = pneg %p212
        %p318 = pneg %p209
        %p319 = pneg %p238
        %p320 = pneg %p235
        %s321 = sand.u32 %s225, 1
        %s322 = scalar_lea.sflag [#allocation3], %s321
        %s323 = sand.u32 %s225, 1
        %s324 = smul.addr %s323, 8
        %s325 = scalar_lea.vmem [#allocation2], %s324
        %p326 = scmp.lt.s32.totalorder %s23, 1
        %s327 = scalar_select %p326, %s23, 1
        %s328 = smul.addr %s327, 2
        %s329 = smul.addr %s328, 4
        %s330 = scalar_lea.vmem %s0, %s329
        %v332 = vld [vmem:[%s330] sm:$0xff]
        %v334 = vcombine.high %v332, %v332
        %v336 = vpack.c.bf16 %v332, %v332
        %v337 = vpack.c.bf16 %v334, %v334
        %v338 = vld [vmem:[%s5] sm:$0xf]
        %v339 = vld [vmem:[%s5 + $0x4] sm:$0xf]
        %v340 = vld [vmem:[%s5 + $0x8] sm:$0xf]
        %v341 = vld [vmem:[%s5 + $0xc] sm:$0xf]
        %v342 = vld [vmem:[%s5 + $0x10] sm:$0xf]
        %v343 = vld [vmem:[%s5 + $0x14] sm:$0xf]
        %v344 = vld [vmem:[%s5 + $0x18] sm:$0xf]
        %v345 = vld [vmem:[%s5 + $0x1c] sm:$0xf]
        %v346 = vld [vmem:[%s5 + $0x20] sm:$0xf]
        %v347 = vld [vmem:[%s5 + $0x24] sm:$0xf]
        %v348 = vld [vmem:[%s5 + $0x28] sm:$0xf]
        %v349 = vld [vmem:[%s5 + $0x2c] sm:$0xf]
        %v350 = vld [vmem:[%s5 + $0x30] sm:$0xf]
        %v351 = vld [vmem:[%s5 + $0x34] sm:$0xf]
        %v352 = vld [vmem:[%s5 + $0x38] sm:$0xf]
        %v353 = vld [vmem:[%s5 + $0x3c] sm:$0xf]
        %v354 = vld [vmem:[%s5 + $0x40] sm:$0xf]
        %v355 = vld [vmem:[%s5 + $0x44] sm:$0xf]
        %v356 = vld [vmem:[%s5 + $0x48] sm:$0xf]
        %v357 = vld [vmem:[%s5 + $0x4c] sm:$0xf]
        %v358 = vld [vmem:[%s5 + $0x50] sm:$0xf]
        %v359 = vld [vmem:[%s5 + $0x54] sm:$0xf]
        %v360 = vld [vmem:[%s5 + $0x58] sm:$0xf]
        %v361 = vld [vmem:[%s5 + $0x5c] sm:$0xf]
        %v362 = vld [vmem:[%s5 + $0x60] sm:$0xf]
        %v363 = vld [vmem:[%s5 + $0x64] sm:$0xf]
        %v364 = vld [vmem:[%s5 + $0x68] sm:$0xf]
        %v365 = vld [vmem:[%s5 + $0x6c] sm:$0xf]
        %v366 = vld [vmem:[%s5 + $0x70] sm:$0xf]
        %v367 = vld [vmem:[%s5 + $0x74] sm:$0xf]
        %v368 = vld [vmem:[%s5 + $0x78] sm:$0xf]
        %v369 = vld [vmem:[%s5 + $0x7c] sm:$0xf]
        %v402 = vunpack.c.l.b16 %v338
        %v403 = vunpack.c.l.b16 %v339
        %v404 = vunpack.c.l.b16 %v340
        %v405 = vunpack.c.l.b16 %v341
        %v406 = vunpack.c.l.b16 %v342
        %v407 = vunpack.c.l.b16 %v343
        %v408 = vunpack.c.l.b16 %v344
        %v409 = vunpack.c.l.b16 %v345
        %v410 = vunpack.c.l.b16 %v346
        %v411 = vunpack.c.l.b16 %v347
        %v412 = vunpack.c.l.b16 %v348
        %v413 = vunpack.c.l.b16 %v349
        %v414 = vunpack.c.l.b16 %v350
        %v415 = vunpack.c.l.b16 %v351
        %v416 = vunpack.c.l.b16 %v352
        %v417 = vunpack.c.l.b16 %v353
        %v418 = vunpack.c.l.b16 %v354
        %v419 = vunpack.c.l.b16 %v355
        %v420 = vunpack.c.l.b16 %v356
        %v421 = vunpack.c.l.b16 %v357
        %v422 = vunpack.c.l.b16 %v358
        %v423 = vunpack.c.l.b16 %v359
        %v424 = vunpack.c.l.b16 %v360
        %v425 = vunpack.c.l.b16 %v361
        %v426 = vunpack.c.l.b16 %v362
        %v427 = vunpack.c.l.b16 %v363
        %v428 = vunpack.c.l.b16 %v364
        %v429 = vunpack.c.l.b16 %v365
        %v430 = vunpack.c.l.b16 %v366
        %v431 = vunpack.c.l.b16 %v367
        %v432 = vunpack.c.l.b16 %v368
        %v433 = vunpack.c.l.b16 %v369
        %v434 = vpack.c.b16 %v403, %v402
        %v435 = vpack.c.b16 %v405, %v404
        %v436 = vpack.c.b16 %v407, %v406
        %v437 = vpack.c.b16 %v409, %v408
        %v438 = vpack.c.b16 %v411, %v410
        %v439 = vpack.c.b16 %v413, %v412
        %v440 = vpack.c.b16 %v415, %v414
        %v441 = vpack.c.b16 %v417, %v416
        %v442 = vpack.c.b16 %v419, %v418
        %v443 = vpack.c.b16 %v421, %v420
        %v444 = vpack.c.b16 %v423, %v422
        %v445 = vpack.c.b16 %v425, %v424
        %v446 = vpack.c.b16 %v427, %v426
        %v447 = vpack.c.b16 %v429, %v428
        %v448 = vpack.c.b16 %v431, %v430
        %v449 = vpack.c.b16 %v433, %v432
        %466 = vmatprep.subr.bf16.mxu0 0
        %467 = vmatpush1.bf16.msra.mxu0 %v441
        %468 = vmatprep.subr.bf16.mxu0 0
        %469 = vmatpush1.bf16.msra.mxu0 %v440
        %470 = vmatprep.subr.bf16.mxu0 0
        %471 = vmatpush1.bf16.msra.mxu0 %v439
        %472 = vmatprep.subr.bf16.mxu0 0
        %473 = vmatpush1.bf16.msra.mxu0 %v438
        %474 = vmatprep.subr.bf16.mxu0 0
        %475 = vmatpush1.bf16.msra.mxu0 %v437
        %476 = vmatprep.subr.bf16.mxu0 0
        %477 = vmatpush1.bf16.msra.mxu0 %v436
        %478 = vmatprep.subr.bf16.mxu0 0
        %479 = vmatpush1.bf16.msra.mxu0 %v435
        %480 = vmatprep.subr.bf16.mxu0 0
        %481 = vmatpush1.bf16.msra.mxu0 %v434
        %482 = vmatprep.subr.bf16.mxu0 0
        %483 = vmatpush2.bf16.msra.mxu0 %v449
        %484 = vmatprep.subr.bf16.mxu0 0
        %485 = vmatpush2.bf16.msra.mxu0 %v448
        %486 = vmatprep.subr.bf16.mxu0 0
        %487 = vmatpush2.bf16.msra.mxu0 %v447
        %488 = vmatprep.subr.bf16.mxu0 0
        %489 = vmatpush2.bf16.msra.mxu0 %v446
        %490 = vmatprep.subr.bf16.mxu0 0
        %491 = vmatpush2.bf16.msra.mxu0 %v445
        %492 = vmatprep.subr.bf16.mxu0 0
        %493 = vmatpush2.bf16.msra.mxu0 %v444
        %494 = vmatprep.subr.bf16.mxu0 0
        %495 = vmatpush2.bf16.msra.mxu0 %v443
        %496 = vmatprep.subr.bf16.mxu0 0
        %497 = vmatpush2.bf16.msra.mxu0 %v442
        %498 = vmatprep.mubr.bf16.mxu0 %v337
        %499 = vmatmul.mubr.bf16.gmra.mxu0 %v336
        %v500 = vpop.f32.mrf.mxu0
        %v501 = vadd.f32 0.0, %v500
        %v502 = vpop.f32.mrf.mxu0
        %v503 = vpop.f32.mrf.mxu0
        %v504 = vpop.f32.mrf.mxu0
        %505 = vdwg.mxu0
        %v506 = vld [vmem:[%s6] sm:$0x1]
        %v508 = vlaneseq
        %v509 = vshrl.u32 %v508, 7
        %v510 = vsub.s32 0, %v509
        %v511 = vrot.slane %v506, %v510
        %v513 = vmul.f32 %v501, %v511
        %v514 = vld [vmem:[%s1] sm:$0xf]
        %v515 = vld [vmem:[%s1 + $0x4] sm:$0xf]
        %v516 = vpack.c.bf16 %v513, %v513
        %v517 = vld [vmem:[%s2] sm:$0xff]
        %v518 = vld [vmem:[%s2 + $0x8] sm:$0xff]
        %520 = vset.pattern.permute.xlu0 0
        %521 = vperm.xlu0 %520, %v517
        %v522 = vpop.permute.xlu0 %521
        %525 = vset.pattern.permute.xlu0 0
        %526 = vperm.xlu0 %525, %v518
        %v527 = vpop.permute.xlu0 %526
        %v531 = vunpack.c.l.b16 %v514
        %v532 = vunpack.c.l.b16 %v515
        %v533 = vpack.c.b16 %v532, %v531
        %vm534 = vcmask 31744
        %v536 = vsel %vm534, %v533, 0
        %vm538 = vcmask 1041408
        %v540 = vsel %vm538, %v516, 0
        %542 = vmatprep.subr.bf16.mxu0 0
        %543 = vmatpush1.bf16.msra.mxu0 0
        %544 = vmatprep.subr.bf16.mxu0 0
        %545 = vmatpush1.bf16.msra.mxu0 0
        %546 = vmatprep.subr.bf16.mxu0 0
        %547 = vmatpush1.bf16.msra.mxu0 0
        %548 = vmatprep.subr.bf16.mxu0 0
        %549 = vmatpush1.bf16.msra.mxu0 0
        %550 = vmatprep.subr.bf16.mxu0 0
        %551 = vmatpush1.bf16.msra.mxu0 0
        %552 = vmatprep.subr.bf16.mxu0 0
        %553 = vmatpush1.bf16.msra.mxu0 0
        %554 = vmatprep.subr.bf16.mxu0 0
        %555 = vmatpush1.bf16.msra.mxu0 0
        %556 = vmatprep.subr.bf16.mxu0 0
        %557 = vmatpush1.bf16.msra.mxu0 %v540
        %558 = vmatprep.subr.bf16.mxu0 0
        %559 = vmatpush2.bf16.msra.mxu0 0
        %560 = vmatprep.subr.bf16.mxu0 0
        %561 = vmatpush2.bf16.msra.mxu0 0
        %562 = vmatprep.subr.bf16.mxu0 0
        %563 = vmatpush2.bf16.msra.mxu0 0
        %564 = vmatprep.subr.bf16.mxu0 0
        %565 = vmatpush2.bf16.msra.mxu0 0
        %566 = vmatprep.subr.bf16.mxu0 0
        %567 = vmatpush2.bf16.msra.mxu0 0
        %568 = vmatprep.subr.bf16.mxu0 0
        %569 = vmatpush2.bf16.msra.mxu0 0
        %570 = vmatprep.subr.bf16.mxu0 0
        %571 = vmatpush2.bf16.msra.mxu0 0
        %572 = vmatprep.subr.bf16.mxu0 0
        %573 = vmatpush2.bf16.msra.mxu0 0
        %574 = vmatprep.mubr.bf16.mxu0 0
        %575 = vmatmul.mubr.bf16.gmra.mxu0 %v536
        %v576 = vpop.f32.mrf.mxu0
        %v577 = vadd.f32 %v522, %v576
        %v578 = vpop.f32.mrf.mxu0
        %v579 = vpop.f32.mrf.mxu0
        %v580 = vadd.f32 %v527, %v579
        %v581 = vpop.f32.mrf.mxu0
        %582 = vdwg.mxu0
        %v583 = vadd.f32 %v577, 3.0
        %v584 = vadd.f32 %v580, 3.0
        %v585 = vmax.f32 %v583, 0.0
        %v586 = vmax.f32 %v584, 0.0
        %v587 = vmin.f32 %v585, 6.0
        %v588 = vmin.f32 %v586, 6.0
        %v589 = vmul.f32 %v577, %v587
        %v590 = vmul.f32 %v580, %v588
        %v591 = vmul.f32 %v589, 0.16666667
        %v592 = vmul.f32 %v590, 0.16666667
        %v593 = vld [vmem:[%s3] sm:$0xf]
        %v594 = vpack.c.bf16 %v592, %v591
        %v595 = vld [vmem:[%s4] sm:$0xff]
        %597 = vset.pattern.permute.xlu0 0
        %598 = vperm.xlu0 %597, %v595
        %v599 = vpop.permute.xlu0 %598
        %vm601 = vcmask 130048
        %v603 = vsel %vm601, %v593, 0
        %605 = vmatprep.subr.bf16.mxu0 0
        %606 = vmatpush1.bf16.msra.mxu0 0
        %607 = vmatprep.subr.bf16.mxu0 0
        %608 = vmatpush1.bf16.msra.mxu0 0
        %609 = vmatprep.subr.bf16.mxu0 0
        %610 = vmatpush1.bf16.msra.mxu0 0
        %611 = vmatprep.subr.bf16.mxu0 0
        %612 = vmatpush1.bf16.msra.mxu0 0
        %613 = vmatprep.subr.bf16.mxu0 0
        %614 = vmatpush1.bf16.msra.mxu0 0
        %615 = vmatprep.subr.bf16.mxu0 0
        %616 = vmatpush1.bf16.msra.mxu0 0
        %617 = vmatprep.subr.bf16.mxu0 0
        %618 = vmatpush1.bf16.msra.mxu0 0
        %619 = vmatprep.subr.bf16.mxu0 0
        %620 = vmatpush1.bf16.msra.mxu0 %v594
        %621 = vmatprep.subr.bf16.mxu0 0
        %622 = vmatpush2.bf16.msra.mxu0 0
        %623 = vmatprep.subr.bf16.mxu0 0
        %624 = vmatpush2.bf16.msra.mxu0 0
        %625 = vmatprep.subr.bf16.mxu0 0
        %626 = vmatpush2.bf16.msra.mxu0 0
        %627 = vmatprep.subr.bf16.mxu0 0
        %628 = vmatpush2.bf16.msra.mxu0 0
        %629 = vmatprep.subr.bf16.mxu0 0
        %630 = vmatpush2.bf16.msra.mxu0 0
        %631 = vmatprep.subr.bf16.mxu0 0
        %632 = vmatpush2.bf16.msra.mxu0 0
        %633 = vmatprep.subr.bf16.mxu0 0
        %634 = vmatpush2.bf16.msra.mxu0 0
        %635 = vmatprep.subr.bf16.mxu0 0
        %636 = vmatpush2.bf16.msra.mxu0 0
        %637 = vmatprep.mubr.bf16.mxu0 0
        %638 = vmatmul.mubr.bf16.gmra.mxu0 %v603
        %v639 = vpop.f32.mrf.mxu0
        %v640 = vadd.f32 %v599, %v639
        %v641 = vpop.f32.mrf.mxu0
        %v642 = vpop.f32.mrf.mxu0
        %v643 = vpop.f32.mrf.mxu0
        %644 = vdwg.mxu0
        %v645 = vxor.u32 %v640, 2147483648
        %v646 = vmul.f32 %v645, 1.442695
        %v647 = vpow.pop %v646
        %v648 = vadd.f32 %v647, 1.0
        %v649 = vrcp.pop %v648
        %v650 = vmul.f32 1.0, %v649
        %v651 = vpack.c.bf16 %v650, %v650
        %v652 = vld [vmem:[%s7] sm:$0xff]
        %v653 = vld [vmem:[%s7 + $0x8] sm:$0xff]
        %v654 = vld [vmem:[%s7 + $0x10] sm:$0xff]
        %v655 = vld [vmem:[%s7 + $0x18] sm:$0xff]
        %v660 = vunpack.c.l.b16 %v652
        %v661 = vunpack.c.h.b16 %v652
        %v662 = vunpack.c.l.b16 %v653
        %v663 = vunpack.c.h.b16 %v653
        %v664 = vunpack.c.l.b16 %v654
        %v665 = vunpack.c.h.b16 %v654
        %v666 = vunpack.c.l.b16 %v655
        %v667 = vunpack.c.h.b16 %v655
        %v668 = vpack.c.b16 %v662, %v660
        %v669 = vpack.c.b16 %v663, %v661
        %v670 = vpack.c.b16 %v666, %v664
        %v671 = vpack.c.b16 %v667, %v665
        %vm676 = vcmask 261120
        %v678 = vsel %vm676, %v651, 0
        %680 = vmatprep.subr.bf16.mxu0 0
        %681 = vmatpush1.bf16.msra.mxu0 0
        %682 = vmatprep.subr.bf16.mxu0 0
        %683 = vmatpush1.bf16.msra.mxu0 0
        %684 = vmatprep.subr.bf16.mxu0 0
        %685 = vmatpush1.bf16.msra.mxu0 0
        %686 = vmatprep.subr.bf16.mxu0 0
        %687 = vmatpush1.bf16.msra.mxu0 0
        %688 = vmatprep.subr.bf16.mxu0 0
        %689 = vmatpush1.bf16.msra.mxu0 0
        %690 = vmatprep.subr.bf16.mxu0 0
        %691 = vmatpush1.bf16.msra.mxu0 0
        %692 = vmatprep.subr.bf16.mxu0 %v671
        %693 = vmatpush1.bf16.msra.mxu0 %v670
        %694 = vmatprep.subr.bf16.mxu0 %v669
        %695 = vmatpush1.bf16.msra.mxu0 %v668
        %696 = vmatprep.subr.bf16.mxu0 0
        %697 = vmatpush2.bf16.msra.mxu0 0
        %698 = vmatprep.subr.bf16.mxu0 0
        %699 = vmatpush2.bf16.msra.mxu0 0
        %700 = vmatprep.subr.bf16.mxu0 0
        %701 = vmatpush2.bf16.msra.mxu0 0
        %702 = vmatprep.subr.bf16.mxu0 0
        %703 = vmatpush2.bf16.msra.mxu0 0
        %704 = vmatprep.subr.bf16.mxu0 0
        %705 = vmatpush2.bf16.msra.mxu0 0
        %706 = vmatprep.subr.bf16.mxu0 0
        %707 = vmatpush2.bf16.msra.mxu0 0
        %708 = vmatprep.subr.bf16.mxu0 0
        %709 = vmatpush2.bf16.msra.mxu0 0
        %710 = vmatprep.subr.bf16.mxu0 0
        %711 = vmatpush2.bf16.msra.mxu0 0
        %712 = vmatprep.mubr.bf16.mxu0 0
        %713 = vmatmul.mubr.bf16.gmra.mxu0 %v678
        %v714 = vpop.f32.mrf.mxu0
        %v715 = vadd.f32 0.0, %v714
        %v716 = vpop.f32.mrf.mxu0
        %v717 = vadd.f32 0.0, %v716
        %v718 = vpop.f32.mrf.mxu0
        %v719 = vpop.f32.mrf.mxu0
        %720 = vdwg.mxu0
        %v721 = vld [vmem:[%s8] sm:$0xff]
        %v722 = vld [vmem:[%s8 + $0x8] sm:$0xff]
        %v723 = vld [vmem:[%s8 + $0x10] sm:$0xff]
        %v724 = vld [vmem:[%s8 + $0x18] sm:$0xff]
        %v726 = vrot.slane %v651, 2
        %v731 = vunpack.c.l.b16 %v721
        %v732 = vunpack.c.h.b16 %v721
        %v733 = vunpack.c.l.b16 %v722
        %v734 = vunpack.c.h.b16 %v722
        %v735 = vunpack.c.l.b16 %v723
        %v736 = vunpack.c.h.b16 %v723
        %v737 = vunpack.c.l.b16 %v724
        %v738 = vunpack.c.h.b16 %v724
        %v739 = vpack.c.b16 %v733, %v731
        %v740 = vpack.c.b16 %v734, %v732
        %v741 = vpack.c.b16 %v737, %v735
        %v742 = vpack.c.b16 %v738, %v736
        %v748 = vsel %vm676, %v726, 0
        %750 = vmatprep.subr.bf16.mxu0 0
        %751 = vmatpush1.bf16.msra.mxu0 0
        %752 = vmatprep.subr.bf16.mxu0 0
        %753 = vmatpush1.bf16.msra.mxu0 0
        %754 = vmatprep.subr.bf16.mxu0 0
        %755 = vmatpush1.bf16.msra.mxu0 0
        %756 = vmatprep.subr.bf16.mxu0 0
        %757 = vmatpush1.bf16.msra.mxu0 0
        %758 = vmatprep.subr.bf16.mxu0 0
        %759 = vmatpush1.bf16.msra.mxu0 0
        %760 = vmatprep.subr.bf16.mxu0 0
        %761 = vmatpush1.bf16.msra.mxu0 0
        %762 = vmatprep.subr.bf16.mxu0 %v742
        %763 = vmatpush1.bf16.msra.mxu0 %v741
        %764 = vmatprep.subr.bf16.mxu0 %v740
        %765 = vmatpush1.bf16.msra.mxu0 %v739
        %766 = vmatprep.subr.bf16.mxu0 0
        %767 = vmatpush2.bf16.msra.mxu0 0
        %768 = vmatprep.subr.bf16.mxu0 0
        %769 = vmatpush2.bf16.msra.mxu0 0
        %770 = vmatprep.subr.bf16.mxu0 0
        %771 = vmatpush2.bf16.msra.mxu0 0
        %772 = vmatprep.subr.bf16.mxu0 0
        %773 = vmatpush2.bf16.msra.mxu0 0
        %774 = vmatprep.subr.bf16.mxu0 0
        %775 = vmatpush2.bf16.msra.mxu0 0
        %776 = vmatprep.subr.bf16.mxu0 0
        %777 = vmatpush2.bf16.msra.mxu0 0
        %778 = vmatprep.subr.bf16.mxu0 0
        %779 = vmatpush2.bf16.msra.mxu0 0
        %780 = vmatprep.subr.bf16.mxu0 0
        %781 = vmatpush2.bf16.msra.mxu0 0
        %782 = vmatprep.mubr.bf16.mxu0 0
        %783 = vmatmul.mubr.bf16.gmra.mxu0 %v748
        %v784 = vpop.f32.mrf.mxu0
        %v785 = vadd.f32 0.0, %v784
        %v786 = vpop.f32.mrf.mxu0
        %v787 = vadd.f32 0.0, %v786
        %v788 = vpop.f32.mrf.mxu0
        %v789 = vpop.f32.mrf.mxu0
        %790 = vdwg.mxu0
        %v791 = vmul.f32 %v715, %v785
        %v792 = vmul.f32 %v717, %v787
        %v795 = vcombine.low %v791, %v792
        %797 = vst [vmem:[%s325] sm:$0xff] %v795
        %s798 = sand.u32 %s225, 1
        %s799 = scalar_lea.sflag [#allocation3], %s798
        %s800 = sand.u32 %s225, 1
        %s801 = smul.addr %s800, 8
        %s802 = scalar_lea.vmem [#allocation2], %s801
        // Predicated region
        $region57: #{tpu_custom_call.1} parent=55 // pred_check
          %p803 = pneg %p235
        $region58: #{tpu_custom_call.1} parent=55 // pred_check_branch
          %805 = sbr.rel (%p803) target = $region60
        $region59: #{tpu_custom_call.1} parent=55 // pred_region
          %s807 = ssub.s32 128, 128
          %808 = vsyncadd %s799, %s807
          %s809 = smul.addr %s23, 2
          %s810 = smul.addr %s809, 64
          %s811 = scalar_lea.hbm %s9, %s810
          %s813 = sshll.u32 %s802, 4
          %s814 = int_to_ptr.vmem [resolvable:$true] %s813
          %816 = dma.vmem_to_hbm [thread:$0]  %s814, 128, %s811, %s799
        $region60: #{tpu_custom_call.1} parent=55 // pred_fallthru
          _
      $region56: #{tpu_custom_call.1} parent=5 // pred_fallthru
        _
      %p817 = scmp.le.s32.totalorder 2, %s18
      // Predicated region
      $region61: #{tpu_custom_call.1} parent=5 // pred_check
        %p818 = pneg %p817
      $region62: #{tpu_custom_call.1} parent=5 // pred_check_branch
        %820 = sbr.rel (%p818) target = $region64
      $region63: #{tpu_custom_call.1} parent=5 // pred_region
        %s821 = ssub.s32 %s18, 2
        // Predicated region
        $region65: #{tpu_custom_call.1} parent=63 // pred_check
          %p822 = pneg %p241
        $region66: #{tpu_custom_call.1} parent=63 // pred_check_branch
          %824 = sbr.rel (%p822) target = $region68
        $region67: #{tpu_custom_call.1} parent=63 // pred_region
          %s825 = sand.u32 %s226, 1
          %s826 = scalar_lea.sflag [#allocation3], %s825
          %s827 = sand.u32 %s226, 1
          %s828 = smul.addr %s827, 8
          %s829 = scalar_lea.vmem [#allocation2], %s828
          %830 = dma.done %s826, 128
        $region68: #{tpu_custom_call.1} parent=63 // pred_fallthru
          _
      $region64: #{tpu_custom_call.1} parent=5 // pred_fallthru
        _
    $region6: #{tpu_custom_call.1} parent=1 // loop_footer
      %s22 = sadd.s32 1, %s18
    $region7: #{tpu_custom_call.1} parent=1 // loop_footer_branch
      %17 = sbr.rel target = $region3
    $region8: #{tpu_custom_call.1} parent=1 // loop_exit
      _
    %831 = vsyncpa [#allocation3], 1
    %s832 = scalar_lea.sflag [#allocation3], 1
    %833 = vsyncpa %s832, 1

// kernel: tpu_custom_call.1
$region0: #{tpu_custom_call.1}
  #allocation0 [shape = 'u32[]', space=smem, size = 0x4, offset = 0x4, fixed_abs, tag = 'smem constant byte address 0x4 - core index']
  #allocation1 [shape = 'u32[144,128]{1,0:T(1,128)}', space=vmem, size = 0x12000, scoped, tag = 'internal scratch']
  %s0 = inlined_call_operand.vmem [shape: f32[2,4,256], index: 0, kind: input, shape index: {}]
  %s1 = inlined_call_operand.vmem [shape: bf16[16,4], index: 1, kind: input, shape index: {}]
  %s2 = inlined_call_operand.vmem [shape: f32[16,1], index: 2, kind: input, shape index: {}]
  %s3 = inlined_call_operand.vmem [shape: bf16[8,16], index: 3, kind: input, shape index: {}]
  %s4 = inlined_call_operand.vmem [shape: f32[8,1], index: 4, kind: input, shape index: {}]
  %s5 = inlined_call_operand.vmem [shape: bf16[256,32], index: 5, kind: input, shape index: {}]
  %s6 = inlined_call_operand.vmem [shape: f32[1,32], index: 6, kind: input, shape index: {}]
  %s7 = inlined_call_operand.vmem [shape: bf16[32,256], index: 7, kind: input, shape index: {}]
  %s8 = inlined_call_operand.vmem [shape: bf16[32,256], index: 8, kind: input, shape index: {}]
  %s9 = inlined_call_operand.hbm [shape: f32[2,4,256], index: 9, kind: output, shape index: {}]
  %s10 = sld [smem:[#allocation0]]
  $region69: #{tpu_custom_call.1} parent=0
    _
  %s12 = ssub.s32 1, %s10
  %s13 = scalar_select 0, %s12, %s10
  $region1: #{tpu_custom_call.1} parent=0
    #allocation2 [shape = 'u8[8192]{0}', space=vmem, size = 0x2000, scoped, tag = 'output window, operand 0']
    #allocation3 [shape = 's32[2]{0}', space=sflag, size = 0x8, scoped, tag = 'scoped memory for tpu_custom_call.1']
    %14 = vsyncpa [#allocation3], 0
    %s15 = scalar_lea.sflag [#allocation3], 1
    %16 = vsyncpa %s15, 0
    loop: start=0, step=1, limit=4
    $region2: #{tpu_custom_call.1} parent=1 // loop_pre_header
      _
    $region3: #{tpu_custom_call.1} parent=1 // loop_header
      %s18 = sphi 0, %s22
      %p19 = scmp.ge.s32.totalorder %s18, 4
      %s28 = sphi 0, %s30
      %s31 = sphi 0, %s28
      %s32 = sphi 0, %s31
      %s48 = sphi 0, %s32
      %s52 = sphi 0, %s52
      %s54 = sphi 0, %s52
      %s55 = sphi 0, %s54
      %s69 = sphi 0, %s55
      %s73 = sphi 0, %s73
      %s75 = sphi 0, %s73
      %s76 = sphi 0, %s75
      %s90 = sphi 0, %s76
      %s94 = sphi 0, %s94
      %s96 = sphi 0, %s94
      %s97 = sphi 0, %s96
      %s111 = sphi 0, %s97
      %s115 = sphi 0, %s115
      %s117 = sphi 0, %s115
      %s118 = sphi 0, %s117
      %s132 = sphi 0, %s118
      %s136 = sphi 0, %s136
      %s138 = sphi 0, %s136
      %s139 = sphi 0, %s138
      %s153 = sphi 0, %s139
      %s157 = sphi 0, %s157
      %s159 = sphi 0, %s157
      %s160 = sphi 0, %s159
      %s174 = sphi 0, %s160
      %s178 = sphi 0, %s178
      %s180 = sphi 0, %s178
      %s181 = sphi 0, %s180
      %s195 = sphi 0, %s181
      %s199 = sphi 0, %s199
      %s201 = sphi 0, %s199
      %s202 = sphi 0, %s201
      %s216 = sphi 0, %s202
      %s222 = sphi 0, %s224
      %s225 = sphi 0, %s222
      %s226 = sphi 0, %s225
      %s242 = sphi 0, %s226
    $region4: #{tpu_custom_call.1} parent=1 // loop_header_branch
      %21 = sbr.rel (%p19) target = $region8
    $region5: #{tpu_custom_call.1} parent=1 // loop_body
      %s23 = ssub.s32 %s18, 1
      %s24 = ssub.s32 %s18, 2
      %s25 = sadd.s32 %s18, 1
      %s26 = ssub.s32 %s18, %s25
      %p27 = scmp.eq.s32.totalorder %s26, 0
      %s29 = sadd.s32 %s28, 1
      %s30 = scalar_select %p27, %s28, %s29
      %p33 = pneg %p27
      %p34 = scmp.eq.s32.totalorder %s18, 1
      %p35 = por %p33, %p34
      %p36 = scmp.ne.s32.totalorder %s28, %s31
      %p37 = scmp.eq.s32.totalorder %s18, 0
      %p38 = por %p36, %p37
      %p39 = scmp.ne.s32.totalorder %s28, %s31
      %p40 = scmp.eq.s32.totalorder %s23, 1
      %p41 = por %p39, %p40
      %p42 = scmp.ne.s32.totalorder %s31, %s32
      %p43 = scmp.eq.s32.totalorder %s23, 0
      %p44 = por %p42, %p43
      %p45 = scmp.ne.s32.totalorder %s31, %s32
      %p46 = scmp.eq.s32.totalorder %s24, 1
      %p47 = por %p45, %p46
      %p49 = scmp.ne.s32.totalorder %s32, %s48
      %p50 = scmp.eq.s32.totalorder %s24, 0
      %p51 = por %p49, %p50
      %s53 = sadd.s32 %s52, 1
      %p56 = scmp.eq.s32.totalorder %s18, 1
      %p57 = scmp.ne.s32.totalorder %s52, %s54
      %p58 = scmp.eq.s32.totalorder %s18, 0
      %p59 = por %p57, %p58
      %p60 = scmp.ne.s32.totalorder %s52, %s54
      %p61 = scmp.eq.s32.totalorder %s23, 1
      %p62 = por %p60, %p61
      %p63 = scmp.ne.s32.totalorder %s54, %s55
      %p64 = scmp.eq.s32.totalorder %s23, 0
      %p65 = por %p63, %p64
      %p66 = scmp.ne.s32.totalorder %s54, %s55
      %p67 = scmp.eq.s32.totalorder %s24, 1
      %p68 = por %p66, %p67
      %p70 = scmp.ne.s32.totalorder %s55, %s69
      %p71 = scmp.eq.s32.totalorder %s24, 0
      %p72 = por %p70, %p71
      %s74 = sadd.s32 %s73, 1
      %p77 = scmp.eq.s32.totalorder %s18, 1
      %p78 = scmp.ne.s32.totalorder %s73, %s75
      %p79 = scmp.eq.s32.totalorder %s18, 0
      %p80 = por %p78, %p79
      %p81 = scmp.ne.s32.totalorder %s73, %s75
      %p82 = scmp.eq.s32.totalorder %s23, 1
      %p83 = por %p81, %p82
      %p84 = scmp.ne.s32.totalorder %s75, %s76
      %p85 = scmp.eq.s32.totalorder %s23, 0
      %p86 = por %p84, %p85
      %p87 = scmp.ne.s32.totalorder %s75, %s76
      %p88 = scmp.eq.s32.totalorder %s24, 1
      %p89 = por %p87, %p88
      %p91 = scmp.ne.s32.totalorder %s76, %s90
      %p92 = scmp.eq.s32.totalorder %s24, 0
      %p93 = por %p91, %p92
      %s95 = sadd.s32 %s94, 1
      %p98 = scmp.eq.s32.totalorder %s18, 1
      %p99 = scmp.ne.s32.totalorder %s94, %s96
      %p100 = scmp.eq.s32.totalorder %s18, 0
      %p101 = por %p99, %p100
      %p102 = scmp.ne.s32.totalorder %s94, %s96
      %p103 = scmp.eq.s32.totalorder %s23, 1
      %p104 = por %p102, %p103
      %p105 = scmp.ne.s32.totalorder %s96, %s97
      %p106 = scmp.eq.s32.totalorder %s23, 0
      %p107 = por %p105, %p106
      %p108 = scmp.ne.s32.totalorder %s96, %s97
      %p109 = scmp.eq.s32.totalorder %s24, 1
      %p110 = por %p108, %p109
      %p112 = scmp.ne.s32.totalorder %s97, %s111
      %p113 = scmp.eq.s32.totalorder %s24, 0
      %p114 = por %p112, %p113
      %s116 = sadd.s32 %s115, 1
      %p119 = scmp.eq.s32.totalorder %s18, 1
      %p120 = scmp.ne.s32.totalorder %s115, %s117
      %p121 = scmp.eq.s32.totalorder %s18, 0
      %p122 = por %p120, %p121
      %p123 = scmp.ne.s32.totalorder %s115, %s117
      %p124 = scmp.eq.s32.totalorder %s23, 1
      %p125 = por %p123, %p124
      %p126 = scmp.ne.s32.totalorder %s117, %s118
      %p127 = scmp.eq.s32.totalorder %s23, 0
      %p128 = por %p126, %p127
      %p129 = scmp.ne.s32.totalorder %s117, %s118
      %p130 = scmp.eq.s32.totalorder %s24, 1
      %p131 = por %p129, %p130
      %p133 = scmp.ne.s32.totalorder %s118, %s132
      %p134 = scmp.eq.s32.totalorder %s24, 0
      %p135 = por %p133, %p134
      %s137 = sadd.s32 %s136, 1
      %p140 = scmp.eq.s32.totalorder %s18, 1
      %p141 = scmp.ne.s32.totalorder %s136, %s138
      %p142 = scmp.eq.s32.totalorder %s18, 0
      %p143 = por %p141, %p142
      %p144 = scmp.ne.s32.totalorder %s136, %s138
      %p145 = scmp.eq.s32.totalorder %s23, 1
      %p146 = por %p144, %p145
      %p147 = scmp.ne.s32.totalorder %s138, %s139
      %p148 = scmp.eq.s32.totalorder %s23, 0
      %p149 = por %p147, %p148
      %p150 = scmp.ne.s32.totalorder %s138, %s139
      %p151 = scmp.eq.s32.totalorder %s24, 1
      %p152 = por %p150, %p151
      %p154 = scmp.ne.s32.totalorder %s139, %s153
      %p155 = scmp.eq.s32.totalorder %s24, 0
      %p156 = por %p154, %p155
      %s158 = sadd.s32 %s157, 1
      %p161 = scmp.eq.s32.totalorder %s18, 1
      %p162 = scmp.ne.s32.totalorder %s157, %s159
      %p163 = scmp.eq.s32.totalorder %s18, 0
      %p164 = por %p162, %p163
      %p165 = scmp.ne.s32.totalorder %s157, %s159
      %p166 = scmp.eq.s32.totalorder %s23, 1
      %p167 = por %p165, %p166
      %p168 = scmp.ne.s32.totalorder %s159, %s160
      %p169 = scmp.eq.s32.totalorder %s23, 0
      %p170 = por %p168, %p169
      %p171 = scmp.ne.s32.totalorder %s159, %s160
      %p172 = scmp.eq.s32.totalorder %s24, 1
      %p173 = por %p171, %p172
      %p175 = scmp.ne.s32.totalorder %s160, %s174
      %p176 = scmp.eq.s32.totalorder %s24, 0
      %p177 = por %p175, %p176
      %s179 = sadd.s32 %s178, 1
      %p182 = scmp.eq.s32.totalorder %s18, 1
      %p183 = scmp.ne.s32.totalorder %s178, %s180
      %p184 = scmp.eq.s32.totalorder %s18, 0
      %p185 = por %p183, %p184
      %p186 = scmp.ne.s32.totalorder %s178, %s180
      %p187 = scmp.eq.s32.totalorder %s23, 1
      %p188 = por %p186, %p187
      %p189 = scmp.ne.s32.totalorder %s180, %s181
      %p190 = scmp.eq.s32.totalorder %s23, 0
      %p191 = por %p189, %p190
      %p192 = scmp.ne.s32.totalorder %s180, %s181
      %p193 = scmp.eq.s32.totalorder %s24, 1
      %p194 = por %p192, %p193
      %p196 = scmp.ne.s32.totalorder %s181, %s195
      %p197 = scmp.eq.s32.totalorder %s24, 0
      %p198 = por %p196, %p197
      %s200 = sadd.s32 %s199, 1
      %p203 = scmp.eq.s32.totalorder %s18, 1
      %p204 = scmp.ne.s32.totalorder %s199, %s201
      %p205 = scmp.eq.s32.totalorder %s18, 0
      %p206 = por %p204, %p205
      %p207 = scmp.ne.s32.totalorder %s199, %s201
      %p208 = scmp.eq.s32.totalorder %s23, 1
      %p209 = por %p207, %p208
      %p210 = scmp.ne.s32.totalorder %s201, %s202
      %p211 = scmp.eq.s32.totalorder %s23, 0
      %p212 = por %p210, %p211
      %p213 = scmp.ne.s32.totalorder %s201, %s202
      %p214 = scmp.eq.s32.totalorder %s24, 1
      %p215 = por %p213, %p214
      %p217 = scmp.ne.s32.totalorder %s202, %s216
      %p218 = scmp.eq.s32.totalorder %s24, 0
      %p219 = por %p217, %p218
      %s220 = ssub.s32 %s18, %s25
      %p221 = scmp.eq.s32.totalorder %s220, 0
      %s223 = sadd.s32 %s222, 1
      %s224 = scalar_select %p221, %s222, %s223
      %p227 = pneg %p221
      %p228 = scmp.eq.s32.totalorder %s18, 1
      %p229 = por %p227, %p228
      %p230 = scmp.ne.s32.totalorder %s222, %s225
      %p231 = scmp.eq.s32.totalorder %s18, 0
      %p232 = por %p230, %p231
      %p233 = scmp.ne.s32.totalorder %s222, %s225
      %p234 = scmp.eq.s32.totalorder %s23, 1
      %p235 = por %p233, %p234
      %p236 = scmp.ne.s32.totalorder %s225, %s226
      %p237 = scmp.eq.s32.totalorder %s23, 0
      %p238 = por %p236, %p237
      %p239 = scmp.ne.s32.totalorder %s225, %s226
      %p240 = scmp.eq.s32.totalorder %s24, 1
      %p241 = por %p239, %p240
      %p243 = scmp.ne.s32.totalorder %s226, %s242
      %p244 = scmp.eq.s32.totalorder %s24, 0
      %p245 = por %p243, %p244
      %p246 = scmp.le.s32.totalorder 1, %s18
      %p247 = scmp.lt.s32.totalorder %s18, 3
      %p248 = pnand %p246, %p247
      %p249 = pneg %p248
      // Predicated region
      $region9: #{tpu_custom_call.1} parent=5 // pred_check
        _
      $region10: #{tpu_custom_call.1} parent=5 // pred_check_branch
        %251 = sbr.rel (%p248) target = $region12
      $region11: #{tpu_custom_call.1} parent=5 // pred_region
        %s252 = ssub.s32 %s18, 1
        // Predicated region
        $region13: #{tpu_custom_call.1} parent=11 // pred_check
          %p253 = pneg %p65
        $region14: #{tpu_custom_call.1} parent=11 // pred_check_branch
          %255 = sbr.rel (%p253) target = $region16
        $region15: #{tpu_custom_call.1} parent=11 // pred_region
          _
        $region16: #{tpu_custom_call.1} parent=11 // pred_fallthru
          _
        // Predicated region
        $region17: #{tpu_custom_call.1} parent=11 // pred_check
          %p256 = pneg %p86
        $region18: #{tpu_custom_call.1} parent=11 // pred_check_branch
          %258 = sbr.rel (%p256) target = $region20
        $region19: #{tpu_custom_call.1} parent=11 // pred_region
          _
        $region20: #{tpu_custom_call.1} parent=11 // pred_fallthru
          _
        // Predicated region
        $region21: #{tpu_custom_call.1} parent=11 // pred_check
          %p259 = pneg %p107
        $region22: #{tpu_custom_call.1} parent=11 // pred_check_branch
          %261 = sbr.rel (%p259) target = $region24
        $region23: #{tpu_custom_call.1} parent=11 // pred_region
          _
        $region24: #{tpu_custom_call.1} parent=11 // pred_fallthru
          _
        // Predicated region
        $region25: #{tpu_custom_call.1} parent=11 // pred_check
          %p262 = pneg %p128
        $region26: #{tpu_custom_call.1} parent=11 // pred_check_branch
          %264 = sbr.rel (%p262) target = $region28
        $region27: #{tpu_custom_call.1} parent=11 // pred_region
          _
        $region28: #{tpu_custom_call.1} parent=11 // pred_fallthru
          _
        // Predicated region
        $region29: #{tpu_custom_call.1} parent=11 // pred_check
          %p265 = pneg %p149
        $region30: #{tpu_custom_call.1} parent=11 // pred_check_branch
          %267 = sbr.rel (%p265) target = $region32
        $region31: #{tpu_custom_call.1} parent=11 // pred_region
          _
        $region32: #{tpu_custom_call.1} parent=11 // pred_fallthru
          _
        // Predicated region
        $region33: #{tpu_custom_call.1} parent=11 // pred_check
          %p268 = pneg %p170
        $region34: #{tpu_custom_call.1} parent=11 // pred_check_branch
          %270 = sbr.rel (%p268) target = $region36
        $region35: #{tpu_custom_call.1} parent=11 // pred_region
          _
        $region36: #{tpu_custom_call.1} parent=11 // pred_fallthru
          _
        // Predicated region
        $region37: #{tpu_custom_call.1} parent=11 // pred_check
          %p271 = pneg %p191
        $region38: #{tpu_custom_call.1} parent=11 // pred_check_branch
          %273 = sbr.rel (%p271) target = $region40
        $region39: #{tpu_custom_call.1} parent=11 // pred_region
          _
        $region40: #{tpu_custom_call.1} parent=11 // pred_fallthru
          _
        // Predicated region
        $region41: #{tpu_custom_call.1} parent=11 // pred_check
          %p274 = pneg %p212
        $region42: #{tpu_custom_call.1} parent=11 // pred_check_branch
          %276 = sbr.rel (%p274) target = $region44
        $region43: #{tpu_custom_call.1} parent=11 // pred_region
          _
        $region44: #{tpu_custom_call.1} parent=11 // pred_fallthru
          _
      $region12: #{tpu_custom_call.1} parent=5 // pred_fallthru
        _
      %p277 = scmp.lt.s32.totalorder %s18, 2
      // Predicated region
      $region45: #{tpu_custom_call.1} parent=5 // pred_check
        %p278 = pneg %p277
      $region46: #{tpu_custom_call.1} parent=5 // pred_check_branch
        %280 = sbr.rel (%p278) target = $region48
      $region47: #{tpu_custom_call.1} parent=5 // pred_region
        // Predicated region
        $region49: #{tpu_custom_call.1} parent=47 // pred_check
          %p281 = pneg %p38
        $region50: #{tpu_custom_call.1} parent=47 // pred_check_branch
          %283 = sbr.rel (%p281) target = $region52
        $region51: #{tpu_custom_call.1} parent=47 // pred_region
          %p284 = scmp.lt.s32.totalorder %s18, 1
          %s285 = scalar_select %p284, %s18, 1
          %s286 = smul.addr %s285, 2
          %s287 = smul.addr %s286, 4
          %s288 = scalar_lea.vmem %s0, %s287
        $region52: #{tpu_custom_call.1} parent=47 // pred_fallthru
          _
      $region48: #{tpu_custom_call.1} parent=5 // pred_fallthru
        _
      %p289 = scmp.le.s32.totalorder 1, %s18
      %p290 = scmp.lt.s32.totalorder %s18, 3
      %p291 = pnand %p289, %p290
      %p292 = pneg %p291
      // Predicated region
      $region53: #{tpu_custom_call.1} parent=5 // pred_check
        _
      $region54: #{tpu_custom_call.1} parent=5 // pred_check_branch
        %294 = sbr.rel (%p291) target = $region56
      $region55: #{tpu_custom_call.1} parent=5 // pred_region
        %s295 = ssub.s32 %s18, 1
        %p296 = scmp.lt.s32.totalorder %s23, 1
        %s297 = scalar_select %p296, %s23, 1
        %s298 = smul.addr %s297, 2
        %s299 = smul.addr %s298, 4
        %s300 = scalar_lea.vmem %s0, %s299
        %p301 = pneg %p44
        %p302 = pneg %p41
        %p303 = pneg %p65
        %p304 = pneg %p62
        %p305 = pneg %p86
        %p306 = pneg %p83
        %p307 = pneg %p107
        %p308 = pneg %p104
        %p309 = pneg %p128
        %p310 = pneg %p125
        %p311 = pneg %p149
        %p312 = pneg %p146
        %p313 = pneg %p170
        %p314 = pneg %p167
        %p315 = pneg %p191
        %p316 = pneg %p188
        %p317 = pneg %p212
        %p318 = pneg %p209
        %p319 = pneg %p238
        %p320 = pneg %p235
        %s321 = sand.u32 %s225, 1
        %s322 = scalar_lea.sflag [#allocation3], %s321
        %s323 = sand.u32 %s225, 1
        %s324 = smul.addr %s323, 8
        %s325 = scalar_lea.vmem [#allocation2], %s324
        %p326 = scmp.lt.s32.totalorder %s23, 1
        %s327 = scalar_select %p326, %s23, 1
        %s328 = smul.addr %s327, 2
        %s329 = smul.addr %s328, 4
        %s330 = scalar_lea.vmem %s0, %s329
        %v332 = vld [vmem:[%s330] sm:$0xff]
        %v334 = vcombine.high %v332, %v332
        %v336 = vpack.c.bf16 %v332, %v332
        %v337 = vpack.c.bf16 %v334, %v334
        %v338 = vld [vmem:[%s5] sm:$0xf]
        %v339 = vld [vmem:[%s5 + $0x4] sm:$0xf]
        %v340 = vld [vmem:[%s5 + $0x8] sm:$0xf]
        %v341 = vld [vmem:[%s5 + $0xc] sm:$0xf]
        %v342 = vld [vmem:[%s5 + $0x10] sm:$0xf]
        %v343 = vld [vmem:[%s5 + $0x14] sm:$0xf]
        %v344 = vld [vmem:[%s5 + $0x18] sm:$0xf]
        %v345 = vld [vmem:[%s5 + $0x1c] sm:$0xf]
        %v346 = vld [vmem:[%s5 + $0x20] sm:$0xf]
        %v347 = vld [vmem:[%s5 + $0x24] sm:$0xf]
        %v348 = vld [vmem:[%s5 + $0x28] sm:$0xf]
        %v349 = vld [vmem:[%s5 + $0x2c] sm:$0xf]
        %v350 = vld [vmem:[%s5 + $0x30] sm:$0xf]
        %v351 = vld [vmem:[%s5 + $0x34] sm:$0xf]
        %v352 = vld [vmem:[%s5 + $0x38] sm:$0xf]
        %v353 = vld [vmem:[%s5 + $0x3c] sm:$0xf]
        %v354 = vld [vmem:[%s5 + $0x40] sm:$0xf]
        %v355 = vld [vmem:[%s5 + $0x44] sm:$0xf]
        %v356 = vld [vmem:[%s5 + $0x48] sm:$0xf]
        %v357 = vld [vmem:[%s5 + $0x4c] sm:$0xf]
        %v358 = vld [vmem:[%s5 + $0x50] sm:$0xf]
        %v359 = vld [vmem:[%s5 + $0x54] sm:$0xf]
        %v360 = vld [vmem:[%s5 + $0x58] sm:$0xf]
        %v361 = vld [vmem:[%s5 + $0x5c] sm:$0xf]
        %v362 = vld [vmem:[%s5 + $0x60] sm:$0xf]
        %v363 = vld [vmem:[%s5 + $0x64] sm:$0xf]
        %v364 = vld [vmem:[%s5 + $0x68] sm:$0xf]
        %v365 = vld [vmem:[%s5 + $0x6c] sm:$0xf]
        %v366 = vld [vmem:[%s5 + $0x70] sm:$0xf]
        %v367 = vld [vmem:[%s5 + $0x74] sm:$0xf]
        %v368 = vld [vmem:[%s5 + $0x78] sm:$0xf]
        %v369 = vld [vmem:[%s5 + $0x7c] sm:$0xf]
        %v402 = vunpack.c.l.b16 %v338
        %v403 = vunpack.c.l.b16 %v339
        %v404 = vunpack.c.l.b16 %v340
        %v405 = vunpack.c.l.b16 %v341
        %v406 = vunpack.c.l.b16 %v342
        %v407 = vunpack.c.l.b16 %v343
        %v408 = vunpack.c.l.b16 %v344
        %v409 = vunpack.c.l.b16 %v345
        %v410 = vunpack.c.l.b16 %v346
        %v411 = vunpack.c.l.b16 %v347
        %v412 = vunpack.c.l.b16 %v348
        %v413 = vunpack.c.l.b16 %v349
        %v414 = vunpack.c.l.b16 %v350
        %v415 = vunpack.c.l.b16 %v351
        %v416 = vunpack.c.l.b16 %v352
        %v417 = vunpack.c.l.b16 %v353
        %v418 = vunpack.c.l.b16 %v354
        %v419 = vunpack.c.l.b16 %v355
        %v420 = vunpack.c.l.b16 %v356
        %v421 = vunpack.c.l.b16 %v357
        %v422 = vunpack.c.l.b16 %v358
        %v423 = vunpack.c.l.b16 %v359
        %v424 = vunpack.c.l.b16 %v360
        %v425 = vunpack.c.l.b16 %v361
        %v426 = vunpack.c.l.b16 %v362
        %v427 = vunpack.c.l.b16 %v363
        %v428 = vunpack.c.l.b16 %v364
        %v429 = vunpack.c.l.b16 %v365
        %v430 = vunpack.c.l.b16 %v366
        %v431 = vunpack.c.l.b16 %v367
        %v432 = vunpack.c.l.b16 %v368
        %v433 = vunpack.c.l.b16 %v369
        %v434 = vpack.c.b16 %v403, %v402
        %v435 = vpack.c.b16 %v405, %v404
        %v436 = vpack.c.b16 %v407, %v406
        %v437 = vpack.c.b16 %v409, %v408
        %v438 = vpack.c.b16 %v411, %v410
        %v439 = vpack.c.b16 %v413, %v412
        %v440 = vpack.c.b16 %v415, %v414
        %v441 = vpack.c.b16 %v417, %v416
        %v442 = vpack.c.b16 %v419, %v418
        %v443 = vpack.c.b16 %v421, %v420
        %v444 = vpack.c.b16 %v423, %v422
        %v445 = vpack.c.b16 %v425, %v424
        %v446 = vpack.c.b16 %v427, %v426
        %v447 = vpack.c.b16 %v429, %v428
        %v448 = vpack.c.b16 %v431, %v430
        %v449 = vpack.c.b16 %v433, %v432
        %466 = vmatprep.subr.bf16.mxu0 0
        %467 = vmatpush1.bf16.msra.mxu0 %v441
        %468 = vmatprep.subr.bf16.mxu0 0
        %469 = vmatpush1.bf16.msra.mxu0 %v440
        %470 = vmatprep.subr.bf16.mxu0 0
        %471 = vmatpush1.bf16.msra.mxu0 %v439
        %472 = vmatprep.subr.bf16.mxu0 0
        %473 = vmatpush1.bf16.msra.mxu0 %v438
        %474 = vmatprep.subr.bf16.mxu0 0
        %475 = vmatpush1.bf16.msra.mxu0 %v437
        %476 = vmatprep.subr.bf16.mxu0 0
        %477 = vmatpush1.bf16.msra.mxu0 %v436
        %478 = vmatprep.subr.bf16.mxu0 0
        %479 = vmatpush1.bf16.msra.mxu0 %v435
        %480 = vmatprep.subr.bf16.mxu0 0
        %481 = vmatpush1.bf16.msra.mxu0 %v434
        %482 = vmatprep.subr.bf16.mxu0 0
        %483 = vmatpush2.bf16.msra.mxu0 %v449
        %484 = vmatprep.subr.bf16.mxu0 0
        %485 = vmatpush2.bf16.msra.mxu0 %v448
        %486 = vmatprep.subr.bf16.mxu0 0
        %487 = vmatpush2.bf16.msra.mxu0 %v447
        %488 = vmatprep.subr.bf16.mxu0 0
        %489 = vmatpush2.bf16.msra.mxu0 %v446
        %490 = vmatprep.subr.bf16.mxu0 0
        %491 = vmatpush2.bf16.msra.mxu0 %v445
        %492 = vmatprep.subr.bf16.mxu0 0
        %493 = vmatpush2.bf16.msra.mxu0 %v444
        %494 = vmatprep.subr.bf16.mxu0 0
        %495 = vmatpush2.bf16.msra.mxu0 %v443
        %496 = vmatprep.subr.bf16.mxu0 0
        %497 = vmatpush2.bf16.msra.mxu0 %v442
        %498 = vmatprep.mubr.bf16.mxu0 %v337
        %499 = vmatmul.mubr.bf16.gmra.mxu0 %v336
        %v500 = vpop.f32.mrf.mxu0
        %v501 = vadd.f32 0.0, %v500
        %v502 = vpop.f32.mrf.mxu0
        %v503 = vpop.f32.mrf.mxu0
        %v504 = vpop.f32.mrf.mxu0
        %505 = vdwg.mxu0
        %v506 = vld [vmem:[%s6] sm:$0x1]
        %v508 = vlaneseq
        %v509 = vshrl.u32 %v508, 7
        %v510 = vsub.s32 0, %v509
        %v511 = vrot.slane %v506, %v510
        %v513 = vmul.f32 %v501, %v511
        %v514 = vld [vmem:[%s1] sm:$0xf]
        %v515 = vld [vmem:[%s1 + $0x4] sm:$0xf]
        %v516 = vpack.c.bf16 %v513, %v513
        %v517 = vld [vmem:[%s2] sm:$0xff]
        %v518 = vld [vmem:[%s2 + $0x8] sm:$0xff]
        %520 = vset.pattern.permute.xlu0 0
        %521 = vperm.xlu0 %520, %v517
        %v522 = vpop.permute.xlu0 %521
        %525 = vset.pattern.permute.xlu0 0
        %526 = vperm.xlu0 %525, %v518
        %v527 = vpop.permute.xlu0 %526
        %v531 = vunpack.c.l.b16 %v514
        %v532 = vunpack.c.l.b16 %v515
        %v533 = vpack.c.b16 %v532, %v531
        %vm534 = vcmask 31744
        %v536 = vsel %vm534, %v533, 0
        %vm538 = vcmask 1041408
        %v540 = vsel %vm538, %v516, 0
        %542 = vmatprep.subr.bf16.mxu0 0
        %543 = vmatpush1.bf16.msra.mxu0 0
        %544 = vmatprep.subr.bf16.mxu0 0
        %545 = vmatpush1.bf16.msra.mxu0 0
        %546 = vmatprep.subr.bf16.mxu0 0
        %547 = vmatpush1.bf16.msra.mxu0 0
        %548 = vmatprep.subr.bf16.mxu0 0
        %549 = vmatpush1.bf16.msra.mxu0 0
        %550 = vmatprep.subr.bf16.mxu0 0
        %551 = vmatpush1.bf16.msra.mxu0 0
        %552 = vmatprep.subr.bf16.mxu0 0
        %553 = vmatpush1.bf16.msra.mxu0 0
        %554 = vmatprep.subr.bf16.mxu0 0
        %555 = vmatpush1.bf16.msra.mxu0 0
        %556 = vmatprep.subr.bf16.mxu0 0
        %557 = vmatpush1.bf16.msra.mxu0 %v540
        %558 = vmatprep.subr.bf16.mxu0 0
        %559 = vmatpush2.bf16.msra.mxu0 0
        %560 = vmatprep.subr.bf16.mxu0 0
        %561 = vmatpush2.bf16.msra.mxu0 0
        %562 = vmatprep.subr.bf16.mxu0 0
        %563 = vmatpush2.bf16.msra.mxu0 0
        %564 = vmatprep.subr.bf16.mxu0 0
        %565 = vmatpush2.bf16.msra.mxu0 0
        %566 = vmatprep.subr.bf16.mxu0 0
        %567 = vmatpush2.bf16.msra.mxu0 0
        %568 = vmatprep.subr.bf16.mxu0 0
        %569 = vmatpush2.bf16.msra.mxu0 0
        %570 = vmatprep.subr.bf16.mxu0 0
        %571 = vmatpush2.bf16.msra.mxu0 0
        %572 = vmatprep.subr.bf16.mxu0 0
        %573 = vmatpush2.bf16.msra.mxu0 0
        %574 = vmatprep.mubr.bf16.mxu0 0
        %575 = vmatmul.mubr.bf16.gmra.mxu0 %v536
        %v576 = vpop.f32.mrf.mxu0
        %v577 = vadd.f32 %v522, %v576
        %v578 = vpop.f32.mrf.mxu0
        %v579 = vpop.f32.mrf.mxu0
        %v580 = vadd.f32 %v527, %v579
        %v581 = vpop.f32.mrf.mxu0
        %582 = vdwg.mxu0
        %v583 = vadd.f32 %v577, 3.0
        %v584 = vadd.f32 %v580, 3.0
        %v585 = vmax.f32 %v583, 0.0
        %v586 = vmax.f32 %v584, 0.0
        %v587 = vmin.f32 %v585, 6.0
        %v588 = vmin.f32 %v586, 6.0
        %v589 = vmul.f32 %v577, %v587
        %v590 = vmul.f32 %v580, %v588
        %v591 = vmul.f32 %v589, 0.16666667
        %v592 = vmul.f32 %v590, 0.16666667
        %v593 = vld [vmem:[%s3] sm:$0xf]
        %v594 = vpack.c.bf16 %v592, %v591
        %v595 = vld [vmem:[%s4] sm:$0xff]
        %597 = vset.pattern.permute.xlu0 0
        %598 = vperm.xlu0 %597, %v595
        %v599 = vpop.permute.xlu0 %598
        %vm601 = vcmask 130048
        %v603 = vsel %vm601, %v593, 0
        %605 = vmatprep.subr.bf16.mxu0 0
        %606 = vmatpush1.bf16.msra.mxu0 0
        %607 = vmatprep.subr.bf16.mxu0 0
        %608 = vmatpush1.bf16.msra.mxu0 0
        %609 = vmatprep.subr.bf16.mxu0 0
        %610 = vmatpush1.bf16.msra.mxu0 0
        %611 = vmatprep.subr.bf16.mxu0 0
        %612 = vmatpush1.bf16.msra.mxu0 0
        %613 = vmatprep.subr.bf16.mxu0 0
        %614 = vmatpush1.bf16.msra.mxu0 0
        %615 = vmatprep.subr.bf16.mxu0 0
        %616 = vmatpush1.bf16.msra.mxu0 0
        %617 = vmatprep.subr.bf16.mxu0 0
        %618 = vmatpush1.bf16.msra.mxu0 0
        %619 = vmatprep.subr.bf16.mxu0 0
        %620 = vmatpush1.bf16.msra.mxu0 %v594
        %621 = vmatprep.subr.bf16.mxu0 0
        %622 = vmatpush2.bf16.msra.mxu0 0
        %623 = vmatprep.subr.bf16.mxu0 0
        %624 = vmatpush2.bf16.msra.mxu0 0
        %625 = vmatprep.subr.bf16.mxu0 0
        %626 = vmatpush2.bf16.msra.mxu0 0
        %627 = vmatprep.subr.bf16.mxu0 0
        %628 = vmatpush2.bf16.msra.mxu0 0
        %629 = vmatprep.subr.bf16.mxu0 0
        %630 = vmatpush2.bf16.msra.mxu0 0
        %631 = vmatprep.subr.bf16.mxu0 0
        %632 = vmatpush2.bf16.msra.mxu0 0
        %633 = vmatprep.subr.bf16.mxu0 0
        %634 = vmatpush2.bf16.msra.mxu0 0
        %635 = vmatprep.subr.bf16.mxu0 0
        %636 = vmatpush2.bf16.msra.mxu0 0
        %637 = vmatprep.mubr.bf16.mxu0 0
        %638 = vmatmul.mubr.bf16.gmra.mxu0 %v603
        %v639 = vpop.f32.mrf.mxu0
        %v640 = vadd.f32 %v599, %v639
        %v641 = vpop.f32.mrf.mxu0
        %v642 = vpop.f32.mrf.mxu0
        %v643 = vpop.f32.mrf.mxu0
        %644 = vdwg.mxu0
        %v645 = vxor.u32 %v640, 2147483648
        %v646 = vmul.f32 %v645, 1.442695
        %v647 = vpow.pop %v646
        %v648 = vadd.f32 %v647, 1.0
        %v649 = vrcp.pop %v648
        %v650 = vmul.f32 1.0, %v649
        %v651 = vpack.c.bf16 %v650, %v650
        %v652 = vld [vmem:[%s7] sm:$0xff]
        %v653 = vld [vmem:[%s7 + $0x8] sm:$0xff]
        %v654 = vld [vmem:[%s7 + $0x10] sm:$0xff]
        %v655 = vld [vmem:[%s7 + $0x18] sm:$0xff]
        %v660 = vunpack.c.l.b16 %v652
        %v661 = vunpack.c.h.b16 %v652
        %v662 = vunpack.c.l.b16 %v653
        %v663 = vunpack.c.h.b16 %v653
        %v664 = vunpack.c.l.b16 %v654
        %v665 = vunpack.c.h.b16 %v654
        %v666 = vunpack.c.l.b16 %v655
        %v667 = vunpack.c.h.b16 %v655
        %v668 = vpack.c.b16 %v662, %v660
        %v669 = vpack.c.b16 %v663, %v661
        %v670 = vpack.c.b16 %v666, %v664
        %v671 = vpack.c.b16 %v667, %v665
        %vm676 = vcmask 261120
        %v678 = vsel %vm676, %v651, 0
        %680 = vmatprep.subr.bf16.mxu0 0
        %681 = vmatpush1.bf16.msra.mxu0 0
        %682 = vmatprep.subr.bf16.mxu0 0
        %683 = vmatpush1.bf16.msra.mxu0 0
        %684 = vmatprep.subr.bf16.mxu0 0
        %685 = vmatpush1.bf16.msra.mxu0 0
        %686 = vmatprep.subr.bf16.mxu0 0
        %687 = vmatpush1.bf16.msra.mxu0 0
        %688 = vmatprep.subr.bf16.mxu0 0
        %689 = vmatpush1.bf16.msra.mxu0 0
        %690 = vmatprep.subr.bf16.mxu0 0
        %691 = vmatpush1.bf16.msra.mxu0 0
        %692 = vmatprep.subr.bf16.mxu0 %v671
        %693 = vmatpush1.bf16.msra.mxu0 %v670
        %694 = vmatprep.subr.bf16.mxu0 %v669
        %695 = vmatpush1.bf16.msra.mxu0 %v668
        %696 = vmatprep.subr.bf16.mxu0 0
        %697 = vmatpush2.bf16.msra.mxu0 0
        %698 = vmatprep.subr.bf16.mxu0 0
        %699 = vmatpush2.bf16.msra.mxu0 0
        %700 = vmatprep.subr.bf16.mxu0 0
        %701 = vmatpush2.bf16.msra.mxu0 0
        %702 = vmatprep.subr.bf16.mxu0 0
        %703 = vmatpush2.bf16.msra.mxu0 0
        %704 = vmatprep.subr.bf16.mxu0 0
        %705 = vmatpush2.bf16.msra.mxu0 0
        %706 = vmatprep.subr.bf16.mxu0 0
        %707 = vmatpush2.bf16.msra.mxu0 0
        %708 = vmatprep.subr.bf16.mxu0 0
        %709 = vmatpush2.bf16.msra.mxu0 0
        %710 = vmatprep.subr.bf16.mxu0 0
        %711 = vmatpush2.bf16.msra.mxu0 0
        %712 = vmatprep.mubr.bf16.mxu0 0
        %713 = vmatmul.mubr.bf16.gmra.mxu0 %v678
        %v714 = vpop.f32.mrf.mxu0
        %v715 = vadd.f32 0.0, %v714
        %v716 = vpop.f32.mrf.mxu0
        %v717 = vadd.f32 0.0, %v716
        %v718 = vpop.f32.mrf.mxu0
        %v719 = vpop.f32.mrf.mxu0
        %720 = vdwg.mxu0
        %v721 = vld [vmem:[%s8] sm:$0xff]
        %v722 = vld [vmem:[%s8 + $0x8] sm:$0xff]
        %v723 = vld [vmem:[%s8 + $0x10] sm:$0xff]
        %v724 = vld [vmem:[%s8 + $0x18] sm:$0xff]
        %v726 = vrot.slane %v651, 2
        %v731 = vunpack.c.l.b16 %v721
        %v732 = vunpack.c.h.b16 %v721
        %v733 = vunpack.c.l.b16 %v722
        %v734 = vunpack.c.h.b16 %v722
        %v735 = vunpack.c.l.b16 %v723
        %v736 = vunpack.c.h.b16 %v723
        %v737 = vunpack.c.l.b16 %v724
        %v738 = vunpack.c.h.b16 %v724
        %v739 = vpack.c.b16 %v733, %v731
        %v740 = vpack.c.b16 %v734, %v732
        %v741 = vpack.c.b16 %v737, %v735
        %v742 = vpack.c.b16 %v738, %v736
        %v748 = vsel %vm676, %v726, 0
        %750 = vmatprep.subr.bf16.mxu0 0
        %751 = vmatpush1.bf16.msra.mxu0 0
        %752 = vmatprep.subr.bf16.mxu0 0
        %753 = vmatpush1.bf16.msra.mxu0 0
        %754 = vmatprep.subr.bf16.mxu0 0
        %755 = vmatpush1.bf16.msra.mxu0 0
        %756 = vmatprep.subr.bf16.mxu0 0
        %757 = vmatpush1.bf16.msra.mxu0 0
        %758 = vmatprep.subr.bf16.mxu0 0
        %759 = vmatpush1.bf16.msra.mxu0 0
        %760 = vmatprep.subr.bf16.mxu0 0
        %761 = vmatpush1.bf16.msra.mxu0 0
        %762 = vmatprep.subr.bf16.mxu0 %v742
        %763 = vmatpush1.bf16.msra.mxu0 %v741
        %764 = vmatprep.subr.bf16.mxu0 %v740
        %765 = vmatpush1.bf16.msra.mxu0 %v739
        %766 = vmatprep.subr.bf16.mxu0 0
        %767 = vmatpush2.bf16.msra.mxu0 0
        %768 = vmatprep.subr.bf16.mxu0 0
        %769 = vmatpush2.bf16.msra.mxu0 0
        %770 = vmatprep.subr.bf16.mxu0 0
        %771 = vmatpush2.bf16.msra.mxu0 0
        %772 = vmatprep.subr.bf16.mxu0 0
        %773 = vmatpush2.bf16.msra.mxu0 0
        %774 = vmatprep.subr.bf16.mxu0 0
        %775 = vmatpush2.bf16.msra.mxu0 0
        %776 = vmatprep.subr.bf16.mxu0 0
        %777 = vmatpush2.bf16.msra.mxu0 0
        %778 = vmatprep.subr.bf16.mxu0 0
        %779 = vmatpush2.bf16.msra.mxu0 0
        %780 = vmatprep.subr.bf16.mxu0 0
        %781 = vmatpush2.bf16.msra.mxu0 0
        %782 = vmatprep.mubr.bf16.mxu0 0
        %783 = vmatmul.mubr.bf16.gmra.mxu0 %v748
        %v784 = vpop.f32.mrf.mxu0
        %v785 = vadd.f32 0.0, %v784
        %v786 = vpop.f32.mrf.mxu0
        %v787 = vadd.f32 0.0, %v786
        %v788 = vpop.f32.mrf.mxu0
        %v789 = vpop.f32.mrf.mxu0
        %790 = vdwg.mxu0
        %v791 = vmul.f32 %v715, %v785
        %v792 = vmul.f32 %v717, %v787
        %v795 = vcombine.low %v791, %v792
        %797 = vst [vmem:[%s325] sm:$0xff] %v795
        %s798 = sand.u32 %s225, 1
        %s799 = scalar_lea.sflag [#allocation3], %s798
        %s800 = sand.u32 %s225, 1
        %s801 = smul.addr %s800, 8
        %s802 = scalar_lea.vmem [#allocation2], %s801
        // Predicated region
        $region57: #{tpu_custom_call.1} parent=55 // pred_check
          %p803 = pneg %p235
        $region58: #{tpu_custom_call.1} parent=55 // pred_check_branch
          %805 = sbr.rel (%p803) target = $region60
        $region59: #{tpu_custom_call.1} parent=55 // pred_region
          %s807 = ssub.s32 128, 128
          %808 = vsyncadd %s799, %s807
          %s809 = smul.addr %s23, 2
          %s810 = smul.addr %s809, 64
          %s811 = scalar_lea.hbm %s9, %s810
          %s813 = sshll.u32 %s802, 4
          %s814 = int_to_ptr.vmem [resolvable:$true] %s813
          %816 = dma.vmem_to_hbm [thread:$0]  %s814, 128, %s811, %s799
        $region60: #{tpu_custom_call.1} parent=55 // pred_fallthru
          _
      $region56: #{tpu_custom_call.1} parent=5 // pred_fallthru
        _
      %p817 = scmp.le.s32.totalorder 2, %s18
      // Predicated region
      $region61: #{tpu_custom_call.1} parent=5 // pred_check
        %p818 = pneg %p817
      $region62: #{tpu_custom_call.1} parent=5 // pred_check_branch
        %820 = sbr.rel (%p818) target = $region64
      $region63: #{tpu_custom_call.1} parent=5 // pred_region
        %s821 = ssub.s32 %s18, 2
        // Predicated region
        $region65: #{tpu_custom_call.1} parent=63 // pred_check
          %p822 = pneg %p241
        $region66: #{tpu_custom_call.1} parent=63 // pred_check_branch
          %824 = sbr.rel (%p822) target = $region68
        $region67: #{tpu_custom_call.1} parent=63 // pred_region
          %s825 = sand.u32 %s226, 1
          %s826 = scalar_lea.sflag [#allocation3], %s825
          %s827 = sand.u32 %s226, 1
          %s828 = smul.addr %s827, 8
          %s829 = scalar_lea.vmem [#allocation2], %s828
          %830 = dma.done %s826, 128
        $region68: #{tpu_custom_call.1} parent=63 // pred_fallthru
          _
      $region64: #{tpu_custom_call.1} parent=5 // pred_fallthru
        _
    $region6: #{tpu_custom_call.1} parent=1 // loop_footer
      %s22 = sadd.s32 1, %s18
    $region7: #{tpu_custom_call.1} parent=1 // loop_footer_branch
      %17 = sbr.rel target = $region3
    $region8: #{tpu_custom_call.1} parent=1 // loop_exit
      _
    %831 = vsyncpa [#allocation3], 1
    %s832 = scalar_lea.sflag [#allocation3], 1
    %833 = vsyncpa %s832, 1

</llo_original>
